<compile_context>
chip_gen: v7x
topology: tpu7x:2x2x1
jax: 0.10.0
libtpu: 0.0.40
codegen_flags: <defaults>
</compile_context>

<pallas_src>
import jax
import jax.numpy as jnp
from jax.experimental import pallas as pl
from jax.experimental.pallas import tpu as pltpu

IN_DIM = 784
HID = 400
OUT_DIM = 10
OUT_PAD = 128  # pad 10 logits -> 128 lanes for an unmasked, lane-dense store


def fc_net1_kernel(x_ref, w1_ref, b1_ref, w2_ref, b2_ref, w3_ref, b3_ref, o_ref):
    # One (TB, 784) f32 activation tile per grid step; weights are VMEM-resident
    # across all grid steps (constant index_map). The f32->bf16 cast is fused
    # here so x makes a single HBM pass. Three MXU matmuls with f32 accumulation;
    # bias add + ReLU run in f32 on the accumulator, then cast back to bf16 for
    # the next dot.
    x = x_ref[...].astype(jnp.bfloat16)                                 # (TB, 784) bf16
    h1 = jnp.dot(x, w1_ref[...], preferred_element_type=jnp.float32)   # (TB, 400) f32
    h1 = jnp.maximum(h1 + b1_ref[...], 0.0).astype(jnp.bfloat16)
    h2 = jnp.dot(h1, w2_ref[...], preferred_element_type=jnp.float32)  # (TB, 400) f32
    h2 = jnp.maximum(h2 + b2_ref[...], 0.0).astype(jnp.bfloat16)
    out = jnp.dot(h2, w3_ref[...], preferred_element_type=jnp.float32)  # (TB, 128) f32
    o_ref[...] = (out + b3_ref[...]).astype(o_ref.dtype)


def pack_params(params):
    """One-time parameter packing: bf16 (in, out) weights, f32 (1, N) biases,
    final layer zero-padded from 10 to 128 output lanes. Accepts biases shaped
    (N,) or (1, N)."""
    w1, b1, w2, b2, w3, b3 = params
    b1 = jnp.asarray(b1, jnp.float32).reshape(1, -1)
    b2 = jnp.asarray(b2, jnp.float32).reshape(1, -1)
    b3 = jnp.asarray(b3, jnp.float32).reshape(1, -1)

    w1_bf = jnp.asarray(w1, jnp.bfloat16)
    w2_bf = jnp.asarray(w2, jnp.bfloat16)
    w3_p = jnp.zeros((w3.shape[0], OUT_PAD), jnp.bfloat16).at[:, :OUT_DIM].set(
        jnp.asarray(w3, jnp.bfloat16))
    b3_p = jnp.zeros((1, OUT_PAD), jnp.float32).at[:, :OUT_DIM].set(b3)
    return (w1_bf, b1, w2_bf, b2, w3_p, b3_p)


def _choose_tb(b_pad, block_b):
    """Pick the batch tile: largest multiple-of-16 divisor of b_pad that is
    <= block_b, preferring >= 2 (ideally an even number of) grid steps so
    v7x's two TensorCores both get work — as long as that does not shrink the
    tile by more than 2x."""
    max_tb = max(16, min(block_b, b_pad))
    divisors = [tb for tb in range(16, max_tb + 1, 16) if b_pad % tb == 0]
    if not divisors:            # unreachable: b_pad is always a multiple of 16
        return 16
    largest = divisors[-1]
    even_steps = [tb for tb in divisors
                  if (b_pad // tb) >= 2 and (b_pad // tb) % 2 == 0
                  and tb * 2 >= largest]
    if even_steps:
        return even_steps[-1]
    two_plus = [tb for tb in divisors
                if (b_pad // tb) >= 2 and tb * 2 >= largest]
    if two_plus:
        return two_plus[-1]
    return largest


def fc_net1_forward(x, packed_params, *, block_b=1024):
    """x: (B, 1, 28, 28) or anything flattening to (B, 784).
    packed_params: output of pack_params(). Returns (B, 10) f32 logits."""
    b = x.shape[0]
    x2d = x.reshape(b, -1).astype(jnp.float32)
    assert x2d.shape[1] == IN_DIM, f"expected {IN_DIM} features, got {x2d.shape[1]}"

    w1_bf, b1, w2_bf, b2, w3_p, b3_p = packed_params

    # Pad batch only up to the next multiple of 16 (bf16 sublane packing), then
    # pick a tile that divides it — avoids a full pad-to-tile copy of x.
    b_pad = ((b + 15) // 16) * 16
    if b_pad != b:
        x2d = jnp.pad(x2d, ((0, b_pad - b), (0, 0)))
    tb = _choose_tb(b_pad, block_b)
    grid = (b_pad // tb,)

    const = lambda i: (0, 0)

    weight_elems = IN_DIM * HID + HID * HID + HID * OUT_PAD
    cost = pl.CostEstimate(
        flops=2 * b_pad * weight_elems,
        transcendentals=0,
        bytes_accessed=(b_pad * IN_DIM * 4            # x (f32 in)
                        + weight_elems * 2            # bf16 weights
                        + (HID + HID + OUT_PAD) * 4   # f32 biases
                        + b_pad * OUT_PAD * 4))       # f32 out

    out = pl.pallas_call(
        fc_net1_kernel,
        out_shape=jax.ShapeDtypeStruct((b_pad, OUT_PAD), jnp.float32),
        grid=grid,
        in_specs=[
            pl.BlockSpec((tb, IN_DIM), lambda i: (i, 0)),   # activation tile stream (f32)
            pl.BlockSpec((IN_DIM, HID), const),             # W1 (VMEM-resident)
            pl.BlockSpec((1, HID), const),                  # b1
            pl.BlockSpec((HID, HID), const),                # W2 (VMEM-resident)
            pl.BlockSpec((1, HID), const),                  # b2
            pl.BlockSpec((HID, OUT_PAD), const),            # W3 padded (VMEM-resident)
            pl.BlockSpec((1, OUT_PAD), const),              # b3 padded
        ],
        out_specs=pl.BlockSpec((tb, OUT_PAD), lambda i: (i, 0)),
        compiler_params=pltpu.CompilerParams(
            dimension_semantics=("parallel",),
            vmem_limit_bytes=48 * 1024 * 1024,
        ),
        cost_estimate=cost,
    )(x2d, w1_bf, b1, w2_bf, b2, w3_p, b3_p)

    return out[:b, :OUT_DIM]


def init_params(key):
    """Deterministic init matching nn.Linear default: U(-1/sqrt(fan_in), +1/sqrt(fan_in))."""
    def linear(key, fan_in, fan_out):
        kw, kb = jax.random.split(key)
        bound = 1.0 / jnp.sqrt(fan_in)
        # Stored as (in, out) for the kernel's x @ W convention.
        w = jax.random.uniform(kw, (fan_in, fan_out), jnp.float32, -bound, bound)
        b = jax.random.uniform(kb, (1, fan_out), jnp.float32, -bound, bound)
        return w, b

    k1, k2, k3 = jax.random.split(key, 3)
    w1, b1 = linear(k1, IN_DIM, HID)
    w2, b2 = linear(k2, HID, HID)
    w3, b3 = linear(k3, HID, OUT_DIM)
    return (w1, b1, w2, b2, w3, b3)


def fc_net1_ref(x, params):
    """Pure-JAX reference using the same bf16-operand / f32-accumulate recipe.
    Note: bf16 matmul operands differ from a pure-f32 PyTorch forward at ~1e-2
    relative on the logits; this reference mirrors the kernel's arithmetic."""
    w1, b1, w2, b2, w3, b3 = params
    h = x.reshape(x.shape[0], -1).astype(jnp.bfloat16)
    h = jnp.dot(h, w1.astype(jnp.bfloat16), preferred_element_type=jnp.float32) + b1.reshape(1, -1)
    h = jnp.maximum(h, 0.0).astype(jnp.bfloat16)
    h = jnp.dot(h, w2.astype(jnp.bfloat16), preferred_element_type=jnp.float32) + b2.reshape(1, -1)
    h = jnp.maximum(h, 0.0).astype(jnp.bfloat16)
    return jnp.dot(h, w3.astype(jnp.bfloat16), preferred_element_type=jnp.float32) + b3.reshape(1, -1)


if __name__ == "__main__":
    key = jax.random.PRNGKey(0)
    kx, kp = jax.random.split(key)

    batch = 4
    x = jax.random.normal(kx, (batch, 1, 28, 28), jnp.float32)  # NCHW -> flattens to 784
    params = init_params(kp)
    packed = pack_params(params)   # one-time packing, outside the per-call path

    out = fc_net1_forward(x, packed)
    out = jax.block_until_ready(out)

    ref = fc_net1_ref(x, params)
    assert out.shape == (batch, 10), out.shape
    assert jnp.allclose(out, ref, atol=2e-3, rtol=2e-3), "mismatch vs reference"

    print("KERNEL_OK")
</pallas_src>

<mosaic_0001>
module attributes {stable_mosaic.version = 11 : i64} {
  func.func @fc_net1_kernel(%arg0: i32, %arg1: memref<16x784xf32, #tpu.memory_space<vmem>>, %arg2: memref<784x400xbf16, #tpu.memory_space<vmem>>, %arg3: memref<1x400xf32, #tpu.memory_space<vmem>>, %arg4: memref<400x400xbf16, #tpu.memory_space<vmem>>, %arg5: memref<1x400xf32, #tpu.memory_space<vmem>>, %arg6: memref<400x128xbf16, #tpu.memory_space<vmem>>, %arg7: memref<1x128xf32, #tpu.memory_space<vmem>>, %arg8: memref<16x128xf32, #tpu.memory_space<vmem>>) attributes {dimension_semantics = [#tpu.dimension_semantics<parallel>], iteration_bounds = array<i64: 1>, scalar_prefetch = 0 : i64, scratch_operands = 0 : i64, tpu.core_type = #tpu.core_type<tc>, window_params = [{transform_indices = @transform_0, window_bounds = array<i64: 16, 784>}, {pipeline_mode = #tpu.pipeline_mode<synchronous>, transform_indices = @transform_1, window_bounds = array<i64: 784, 400>}, {pipeline_mode = #tpu.pipeline_mode<synchronous>, transform_indices = @transform_2, window_bounds = array<i64: 1, 400>}, {pipeline_mode = #tpu.pipeline_mode<synchronous>, transform_indices = @transform_3, window_bounds = array<i64: 400, 400>}, {pipeline_mode = #tpu.pipeline_mode<synchronous>, transform_indices = @transform_4, window_bounds = array<i64: 1, 400>}, {pipeline_mode = #tpu.pipeline_mode<synchronous>, transform_indices = @transform_5, window_bounds = array<i64: 400, 128>}, {pipeline_mode = #tpu.pipeline_mode<synchronous>, transform_indices = @transform_6, window_bounds = array<i64: 1, 128>}, {transform_indices = @transform_7, window_bounds = array<i64: 16, 128>}]} {
    %c0 = arith.constant 0 : index
    %c0_0 = arith.constant 0 : index
    %0 = vector.load %arg1[%c0, %c0_0] : memref<16x784xf32, #tpu.memory_space<vmem>>, vector<16x784xf32>
    %1 = arith.truncf %0 : vector<16x784xf32> to vector<16x784xbf16>
    %c0_1 = arith.constant 0 : index
    %c0_2 = arith.constant 0 : index
    %2 = vector.load %arg2[%c0_1, %c0_2] : memref<784x400xbf16, #tpu.memory_space<vmem>>, vector<784x400xbf16>
    %cst = arith.constant dense<0.000000e+00> : vector<16x400xf32>
    %3 = tpu.matmul %1, %2, %cst {dimension_numbers = #tpu.dot_dimension_numbers<[1], [0], [0], [1], [0, 0, 1, 1], [], []>} : vector<16x784xbf16>, vector<784x400xbf16>, vector<16x400xf32> -> vector<16x400xf32>
    %c0_3 = arith.constant 0 : index
    %c0_4 = arith.constant 0 : index
    %4 = vector.load %arg3[%c0_3, %c0_4] : memref<1x400xf32, #tpu.memory_space<vmem>>, vector<1x400xf32>
    %5 = vector.broadcast %4 : vector<1x400xf32> to vector<16x400xf32>
    %6 = arith.addf %3, %5 : vector<16x400xf32>
    %cst_5 = arith.constant 0.000000e+00 : f32
    %7 = vector.broadcast %cst_5 : f32 to vector<16x400xf32>
    %8 = arith.maximumf %6, %7 : vector<16x400xf32>
    %9 = arith.truncf %8 : vector<16x400xf32> to vector<16x400xbf16>
    %c0_6 = arith.constant 0 : index
    %c0_7 = arith.constant 0 : index
    %10 = vector.load %arg4[%c0_6, %c0_7] : memref<400x400xbf16, #tpu.memory_space<vmem>>, vector<400x400xbf16>
    %cst_8 = arith.constant dense<0.000000e+00> : vector<16x400xf32>
    %11 = tpu.matmul %9, %10, %cst_8 {dimension_numbers = #tpu.dot_dimension_numbers<[1], [0], [0], [1], [0, 0, 1, 1], [], []>} : vector<16x400xbf16>, vector<400x400xbf16>, vector<16x400xf32> -> vector<16x400xf32>
    %c0_9 = arith.constant 0 : index
    %c0_10 = arith.constant 0 : index
    %12 = vector.load %arg5[%c0_9, %c0_10] : memref<1x400xf32, #tpu.memory_space<vmem>>, vector<1x400xf32>
    %13 = vector.broadcast %12 : vector<1x400xf32> to vector<16x400xf32>
    %14 = arith.addf %11, %13 : vector<16x400xf32>
    %cst_11 = arith.constant 0.000000e+00 : f32
    %15 = vector.broadcast %cst_11 : f32 to vector<16x400xf32>
    %16 = arith.maximumf %14, %15 : vector<16x400xf32>
    %17 = arith.truncf %16 : vector<16x400xf32> to vector<16x400xbf16>
    %c0_12 = arith.constant 0 : index
    %c0_13 = arith.constant 0 : index
    %18 = vector.load %arg6[%c0_12, %c0_13] : memref<400x128xbf16, #tpu.memory_space<vmem>>, vector<400x128xbf16>
    %cst_14 = arith.constant dense<0.000000e+00> : vector<16x128xf32>
    %19 = tpu.matmul %17, %18, %cst_14 {dimension_numbers = #tpu.dot_dimension_numbers<[1], [0], [0], [1], [0, 0, 1, 1], [], []>} : vector<16x400xbf16>, vector<400x128xbf16>, vector<16x128xf32> -> vector<16x128xf32>
    %c0_15 = arith.constant 0 : index
    %c0_16 = arith.constant 0 : index
    %20 = vector.load %arg7[%c0_15, %c0_16] : memref<1x128xf32, #tpu.memory_space<vmem>>, vector<1x128xf32>
    %21 = vector.broadcast %20 : vector<1x128xf32> to vector<16x128xf32>
    %22 = arith.addf %19, %21 : vector<16x128xf32>
    %c0_17 = arith.constant 0 : index
    %c0_18 = arith.constant 0 : index
    %23 = vector.load %arg8[%c0_17, %c0_18] : memref<16x128xf32, #tpu.memory_space<vmem>>, vector<16x128xf32>
    tpu.vector_store %arg8[%c0_17, %c0_18], %22 {strides = array<i32>} : memref<16x128xf32, #tpu.memory_space<vmem>>, vector<16x128xf32>,
    return
  }
  func.func @transform_0(%arg0: i32) -> (i32, i32) {
    %c0_i32 = arith.constant 0 : i32
    %c0_i32_0 = arith.constant 0 : i32
    return %arg0, %c0_i32 : i32, i32
  }
  func.func @transform_1(%arg0: i32) -> (i32, i32) {
    %c0_i32 = arith.constant 0 : i32
    %c0_i32_0 = arith.constant 0 : i32
    %c0_i32_1 = arith.constant 0 : i32
    return %c0_i32, %c0_i32_0 : i32, i32
  }
  func.func @transform_2(%arg0: i32) -> (i32, i32) {
    %c0_i32 = arith.constant 0 : i32
    %c0_i32_0 = arith.constant 0 : i32
    %c0_i32_1 = arith.constant 0 : i32
    return %c0_i32, %c0_i32_0 : i32, i32
  }
  func.func @transform_3(%arg0: i32) -> (i32, i32) {
    %c0_i32 = arith.constant 0 : i32
    %c0_i32_0 = arith.constant 0 : i32
    %c0_i32_1 = arith.constant 0 : i32
    return %c0_i32, %c0_i32_0 : i32, i32
  }
  func.func @transform_4(%arg0: i32) -> (i32, i32) {
    %c0_i32 = arith.constant 0 : i32
    %c0_i32_0 = arith.constant 0 : i32
    %c0_i32_1 = arith.constant 0 : i32
    return %c0_i32, %c0_i32_0 : i32, i32
  }
  func.func @transform_5(%arg0: i32) -> (i32, i32) {
    %c0_i32 = arith.constant 0 : i32
    %c0_i32_0 = arith.constant 0 : i32
    %c0_i32_1 = arith.constant 0 : i32
    return %c0_i32, %c0_i32_0 : i32, i32
  }
  func.func @transform_6(%arg0: i32) -> (i32, i32) {
    %c0_i32 = arith.constant 0 : i32
    %c0_i32_0 = arith.constant 0 : i32
    %c0_i32_1 = arith.constant 0 : i32
    return %c0_i32, %c0_i32_0 : i32, i32
  }
  func.func @transform_7(%arg0: i32) -> (i32, i32) {
    %c0_i32 = arith.constant 0 : i32
    %c0_i32_0 = arith.constant 0 : i32
    return %arg0, %c0_i32 : i32, i32
  }
}

</mosaic_0001>

<llo_original>
// kernel: tpu_custom_call.1
$region0: #{tpu_custom_call.1}
  #allocation0 [shape = 'u32[]', space=smem, size = 0x4, offset = 0x4, fixed_abs, tag = 'smem constant byte address 0x4 - core index']
  #allocation1 [shape = 'u32[144,128]{1,0:T(1,128)}', space=vmem, size = 0x12000, scoped, tag = 'internal scratch']
  %s0 = inlined_call_operand.vmem [shape: f32[16,784], index: 0, kind: input, shape index: {}]
  %s1 = inlined_call_operand.vmem [shape: bf16[784,400], index: 1, kind: input, shape index: {}]
  %s2 = inlined_call_operand.vmem [shape: f32[1,400], index: 2, kind: input, shape index: {}]
  %s3 = inlined_call_operand.vmem [shape: bf16[400,400], index: 3, kind: input, shape index: {}]
  %s4 = inlined_call_operand.vmem [shape: f32[1,400], index: 4, kind: input, shape index: {}]
  %s5 = inlined_call_operand.vmem [shape: bf16[400,128], index: 5, kind: input, shape index: {}]
  %s6 = inlined_call_operand.vmem [shape: f32[1,128], index: 6, kind: input, shape index: {}]
  %s7 = inlined_call_operand.hbm [shape: f32[16,128], index: 7, kind: output, shape index: {}]
  %s8 = sld [smem:[#allocation0]]
  $region38: #{tpu_custom_call.1} parent=0
    _
  %s10 = ssub.s32 1, %s8
  %s11 = scalar_select 0, %s10, %s8
  $region1: #{tpu_custom_call.1} parent=0
    #allocation2 [shape = 'u8[8192]{0}', space=vmem, size = 0x2000, scoped, tag = 'output window, operand 0, single buffered']
    #allocation3 [shape = 's32[1]{0}', space=sflag, size = 0x4, scoped, tag = 'scoped memory for tpu_custom_call.1']
    %12 = vsyncpa [#allocation3], 0
    // Predicated region
    $region2: #{tpu_custom_call.1} parent=1 // pred_check
      _
    $region3: #{tpu_custom_call.1} parent=1 // pred_check_branch
      %14 = sbr.rel (0) target = $region5
    $region4: #{tpu_custom_call.1} parent=1 // pred_region
      _
    $region5: #{tpu_custom_call.1} parent=1 // pred_fallthru
      _
    // Predicated region
    $region6: #{tpu_custom_call.1} parent=1 // pred_check
      _
    $region7: #{tpu_custom_call.1} parent=1 // pred_check_branch
      %16 = sbr.rel (0) target = $region9
    $region8: #{tpu_custom_call.1} parent=1 // pred_region
      _
    $region9: #{tpu_custom_call.1} parent=1 // pred_fallthru
      _
    // Predicated region
    $region10: #{tpu_custom_call.1} parent=1 // pred_check
      _
    $region11: #{tpu_custom_call.1} parent=1 // pred_check_branch
      %18 = sbr.rel (0) target = $region13
    $region12: #{tpu_custom_call.1} parent=1 // pred_region
      _
    $region13: #{tpu_custom_call.1} parent=1 // pred_fallthru
      _
    // Predicated region
    $region14: #{tpu_custom_call.1} parent=1 // pred_check
      _
    $region15: #{tpu_custom_call.1} parent=1 // pred_check_branch
      %20 = sbr.rel (0) target = $region17
    $region16: #{tpu_custom_call.1} parent=1 // pred_region
      _
    $region17: #{tpu_custom_call.1} parent=1 // pred_fallthru
      _
    // Predicated region
    $region18: #{tpu_custom_call.1} parent=1 // pred_check
      _
    $region19: #{tpu_custom_call.1} parent=1 // pred_check_branch
      %22 = sbr.rel (0) target = $region21
    $region20: #{tpu_custom_call.1} parent=1 // pred_region
      _
    $region21: #{tpu_custom_call.1} parent=1 // pred_fallthru
      _
    // Predicated region
    $region22: #{tpu_custom_call.1} parent=1 // pred_check
      _
    $region23: #{tpu_custom_call.1} parent=1 // pred_check_branch
      %24 = sbr.rel (0) target = $region25
    $region24: #{tpu_custom_call.1} parent=1 // pred_region
      _
    $region25: #{tpu_custom_call.1} parent=1 // pred_fallthru
      _
    // Predicated region
    $region26: #{tpu_custom_call.1} parent=1 // pred_check
      _
    $region27: #{tpu_custom_call.1} parent=1 // pred_check_branch
      %26 = sbr.rel (0) target = $region29
    $region28: #{tpu_custom_call.1} parent=1 // pred_region
      _
    $region29: #{tpu_custom_call.1} parent=1 // pred_fallthru
      _
    %v28 = vld [vmem:[%s0] sm:$0xff]
    %v29 = vld [vmem:[%s0 + $0x8] sm:$0xff]
    %v30 = vld [vmem:[%s0 + $0x10] sm:$0xff]
    %v31 = vld [vmem:[%s0 + $0x18] sm:$0xff]
    %v32 = vld [vmem:[%s0 + $0x20] sm:$0xff]
    %v33 = vld [vmem:[%s0 + $0x28] sm:$0xff]
    %v34 = vld [vmem:[%s0 + $0x30] sm:$0xff]
    %v35 = vld [vmem:[%s0 + $0x38] sm:$0xff]
    %v36 = vld [vmem:[%s0 + $0x40] sm:$0xff]
    %v37 = vld [vmem:[%s0 + $0x48] sm:$0xff]
    %v38 = vld [vmem:[%s0 + $0x50] sm:$0xff]
    %v39 = vld [vmem:[%s0 + $0x58] sm:$0xff]
    %v40 = vld [vmem:[%s0 + $0x60] sm:$0xff]
    %v41 = vld [vmem:[%s0 + $0x68] sm:$0xff]
    %v42 = vpack.c.bf16 %v35, %v28
    %v43 = vpack.c.bf16 %v36, %v29
    %v44 = vpack.c.bf16 %v37, %v30
    %v45 = vpack.c.bf16 %v38, %v31
    %v46 = vpack.c.bf16 %v39, %v32
    %v47 = vpack.c.bf16 %v40, %v33
    %v48 = vpack.c.bf16 %v41, %v34
    %v49 = vld [vmem:[%s1] sm:$0xff]
    %v50 = vld [vmem:[%s1 + $0x8] sm:$0xff]
    %v51 = vld [vmem:[%s1 + $0x10] sm:$0xff]
    %v52 = vld [vmem:[%s1 + $0x18] sm:$0xff]
    %v53 = vld [vmem:[%s1 + $0x20] sm:$0xff]
    %v54 = vld [vmem:[%s1 + $0x28] sm:$0xff]
    %v55 = vld [vmem:[%s1 + $0x30] sm:$0xff]
    %v56 = vld [vmem:[%s1 + $0x38] sm:$0xff]
    %v57 = vld [vmem:[%s1 + $0x40] sm:$0xff]
    %v58 = vld [vmem:[%s1 + $0x48] sm:$0xff]
    %v59 = vld [vmem:[%s1 + $0x50] sm:$0xff]
    %v60 = vld [vmem:[%s1 + $0x58] sm:$0xff]
    %v61 = vld [vmem:[%s1 + $0x60] sm:$0xff]
    %v62 = vld [vmem:[%s1 + $0x68] sm:$0xff]
    %v63 = vld [vmem:[%s1 + $0x70] sm:$0xff]
    %v64 = vld [vmem:[%s1 + $0x78] sm:$0xff]
    %v65 = vld [vmem:[%s1 + $0x80] sm:$0xff]
    %v66 = vld [vmem:[%s1 + $0x88] sm:$0xff]
    %v67 = vld [vmem:[%s1 + $0x90] sm:$0xff]
    %v68 = vld [vmem:[%s1 + $0x98] sm:$0xff]
    %v69 = vld [vmem:[%s1 + $0xa0] sm:$0xff]
    %v70 = vld [vmem:[%s1 + $0xa8] sm:$0xff]
    %v71 = vld [vmem:[%s1 + $0xb0] sm:$0xff]
    %v72 = vld [vmem:[%s1 + $0xb8] sm:$0xff]
    %v73 = vld [vmem:[%s1 + $0xc0] sm:$0xff]
    %v74 = vld [vmem:[%s1 + $0xc8] sm:$0xff]
    %v75 = vld [vmem:[%s1 + $0xd0] sm:$0xff]
    %v76 = vld [vmem:[%s1 + $0xd8] sm:$0xff]
    %v77 = vld [vmem:[%s1 + $0xe0] sm:$0xff]
    %v78 = vld [vmem:[%s1 + $0xe8] sm:$0xff]
    %v79 = vld [vmem:[%s1 + $0xf0] sm:$0xff]
    %v80 = vld [vmem:[%s1 + $0xf8] sm:$0xff]
    %v81 = vld [vmem:[%s1 + $0x100] sm:$0xff]
    %v82 = vld [vmem:[%s1 + $0x108] sm:$0xff]
    %v83 = vld [vmem:[%s1 + $0x110] sm:$0xff]
    %v84 = vld [vmem:[%s1 + $0x118] sm:$0xff]
    %v85 = vld [vmem:[%s1 + $0x120] sm:$0xff]
    %v86 = vld [vmem:[%s1 + $0x128] sm:$0xff]
    %v87 = vld [vmem:[%s1 + $0x130] sm:$0xff]
    %v88 = vld [vmem:[%s1 + $0x138] sm:$0xff]
    %v89 = vld [vmem:[%s1 + $0x140] sm:$0xff]
    %v90 = vld [vmem:[%s1 + $0x148] sm:$0xff]
    %v91 = vld [vmem:[%s1 + $0x150] sm:$0xff]
    %v92 = vld [vmem:[%s1 + $0x158] sm:$0xff]
    %v93 = vld [vmem:[%s1 + $0x160] sm:$0xff]
    %v94 = vld [vmem:[%s1 + $0x168] sm:$0xff]
    %v95 = vld [vmem:[%s1 + $0x170] sm:$0xff]
    %v96 = vld [vmem:[%s1 + $0x178] sm:$0xff]
    %v97 = vld [vmem:[%s1 + $0x180] sm:$0xff]
    %v98 = vld [vmem:[%s1 + $0x188] sm:$0xff]
    %v99 = vld [vmem:[%s1 + $0x190] sm:$0xff]
    %v100 = vld [vmem:[%s1 + $0x198] sm:$0xff]
    %v101 = vld [vmem:[%s1 + $0x1a0] sm:$0xff]
    %v102 = vld [vmem:[%s1 + $0x1a8] sm:$0xff]
    %v103 = vld [vmem:[%s1 + $0x1b0] sm:$0xff]
    %v104 = vld [vmem:[%s1 + $0x1b8] sm:$0xff]
    %v105 = vld [vmem:[%s1 + $0x1c0] sm:$0xff]
    %v106 = vld [vmem:[%s1 + $0x1c8] sm:$0xff]
    %v107 = vld [vmem:[%s1 + $0x1d0] sm:$0xff]
    %v108 = vld [vmem:[%s1 + $0x1d8] sm:$0xff]
    %v109 = vld [vmem:[%s1 + $0x1e0] sm:$0xff]
    %v110 = vld [vmem:[%s1 + $0x1e8] sm:$0xff]
    %v111 = vld [vmem:[%s1 + $0x1f0] sm:$0xff]
    %v112 = vld [vmem:[%s1 + $0x1f8] sm:$0xff]
    %v113 = vld [vmem:[%s1 + $0x200] sm:$0xff]
    %v114 = vld [vmem:[%s1 + $0x208] sm:$0xff]
    %v115 = vld [vmem:[%s1 + $0x210] sm:$0xff]
    %v116 = vld [vmem:[%s1 + $0x218] sm:$0xff]
    %v117 = vld [vmem:[%s1 + $0x220] sm:$0xff]
    %v118 = vld [vmem:[%s1 + $0x228] sm:$0xff]
    %v119 = vld [vmem:[%s1 + $0x230] sm:$0xff]
    %v120 = vld [vmem:[%s1 + $0x238] sm:$0xff]
    %v121 = vld [vmem:[%s1 + $0x240] sm:$0xff]
    %v122 = vld [vmem:[%s1 + $0x248] sm:$0xff]
    %v123 = vld [vmem:[%s1 + $0x250] sm:$0xff]
    %v124 = vld [vmem:[%s1 + $0x258] sm:$0xff]
    %v125 = vld [vmem:[%s1 + $0x260] sm:$0xff]
    %v126 = vld [vmem:[%s1 + $0x268] sm:$0xff]
    %v127 = vld [vmem:[%s1 + $0x270] sm:$0xff]
    %v128 = vld [vmem:[%s1 + $0x278] sm:$0xff]
    %v129 = vld [vmem:[%s1 + $0x280] sm:$0xff]
    %v130 = vld [vmem:[%s1 + $0x288] sm:$0xff]
    %v131 = vld [vmem:[%s1 + $0x290] sm:$0xff]
    %v132 = vld [vmem:[%s1 + $0x298] sm:$0xff]
    %v133 = vld [vmem:[%s1 + $0x2a0] sm:$0xff]
    %v134 = vld [vmem:[%s1 + $0x2a8] sm:$0xff]
    %v135 = vld [vmem:[%s1 + $0x2b0] sm:$0xff]
    %v136 = vld [vmem:[%s1 + $0x2b8] sm:$0xff]
    %v137 = vld [vmem:[%s1 + $0x2c0] sm:$0xff]
    %v138 = vld [vmem:[%s1 + $0x2c8] sm:$0xff]
    %v139 = vld [vmem:[%s1 + $0x2d0] sm:$0xff]
    %v140 = vld [vmem:[%s1 + $0x2d8] sm:$0xff]
    %v141 = vld [vmem:[%s1 + $0x2e0] sm:$0xff]
    %v142 = vld [vmem:[%s1 + $0x2e8] sm:$0xff]
    %v143 = vld [vmem:[%s1 + $0x2f0] sm:$0xff]
    %v144 = vld [vmem:[%s1 + $0x2f8] sm:$0xff]
    %v145 = vld [vmem:[%s1 + $0x300] sm:$0xff]
    %v146 = vld [vmem:[%s1 + $0x308] sm:$0xff]
    %v147 = vld [vmem:[%s1 + $0x310] sm:$0xff]
    %v148 = vld [vmem:[%s1 + $0x318] sm:$0xff]
    %v149 = vld [vmem:[%s1 + $0x320] sm:$0xff]
    %v150 = vld [vmem:[%s1 + $0x328] sm:$0xff]
    %v151 = vld [vmem:[%s1 + $0x330] sm:$0xff]
    %v152 = vld [vmem:[%s1 + $0x338] sm:$0xff]
    %v153 = vld [vmem:[%s1 + $0x340] sm:$0xff]
    %v154 = vld [vmem:[%s1 + $0x348] sm:$0xff]
    %v155 = vld [vmem:[%s1 + $0x350] sm:$0xff]
    %v156 = vld [vmem:[%s1 + $0x358] sm:$0xff]
    %v157 = vld [vmem:[%s1 + $0x360] sm:$0xff]
    %v158 = vld [vmem:[%s1 + $0x368] sm:$0xff]
    %v159 = vld [vmem:[%s1 + $0x370] sm:$0xff]
    %v160 = vld [vmem:[%s1 + $0x378] sm:$0xff]
    %v161 = vld [vmem:[%s1 + $0x380] sm:$0xff]
    %v162 = vld [vmem:[%s1 + $0x388] sm:$0xff]
    %v163 = vld [vmem:[%s1 + $0x390] sm:$0xff]
    %v164 = vld [vmem:[%s1 + $0x398] sm:$0xff]
    %v165 = vld [vmem:[%s1 + $0x3a0] sm:$0xff]
    %v166 = vld [vmem:[%s1 + $0x3a8] sm:$0xff]
    %v167 = vld [vmem:[%s1 + $0x3b0] sm:$0xff]
    %v168 = vld [vmem:[%s1 + $0x3b8] sm:$0xff]
    %v169 = vld [vmem:[%s1 + $0x3c0] sm:$0xff]
    %v170 = vld [vmem:[%s1 + $0x3c8] sm:$0xff]
    %v171 = vld [vmem:[%s1 + $0x3d0] sm:$0xff]
    %v172 = vld [vmem:[%s1 + $0x3d8] sm:$0xff]
    %v173 = vld [vmem:[%s1 + $0x3e0] sm:$0xff]
    %v174 = vld [vmem:[%s1 + $0x3e8] sm:$0xff]
    %v175 = vld [vmem:[%s1 + $0x3f0] sm:$0xff]
    %v176 = vld [vmem:[%s1 + $0x3f8] sm:$0xff]
    %v177 = vld [vmem:[%s1 + $0x400] sm:$0xff]
    %v178 = vld [vmem:[%s1 + $0x408] sm:$0xff]
    %v179 = vld [vmem:[%s1 + $0x410] sm:$0xff]
    %v180 = vld [vmem:[%s1 + $0x418] sm:$0xff]
    %v181 = vld [vmem:[%s1 + $0x420] sm:$0xff]
    %v182 = vld [vmem:[%s1 + $0x428] sm:$0xff]
    %v183 = vld [vmem:[%s1 + $0x430] sm:$0xff]
    %v184 = vld [vmem:[%s1 + $0x438] sm:$0xff]
    %v185 = vld [vmem:[%s1 + $0x440] sm:$0xff]
    %v186 = vld [vmem:[%s1 + $0x448] sm:$0xff]
    %v187 = vld [vmem:[%s1 + $0x450] sm:$0xff]
    %v188 = vld [vmem:[%s1 + $0x458] sm:$0xff]
    %v189 = vld [vmem:[%s1 + $0x460] sm:$0xff]
    %v190 = vld [vmem:[%s1 + $0x468] sm:$0xff]
    %v191 = vld [vmem:[%s1 + $0x470] sm:$0xff]
    %v192 = vld [vmem:[%s1 + $0x478] sm:$0xff]
    %v193 = vld [vmem:[%s1 + $0x480] sm:$0xff]
    %v194 = vld [vmem:[%s1 + $0x488] sm:$0xff]
    %v195 = vld [vmem:[%s1 + $0x490] sm:$0xff]
    %v196 = vld [vmem:[%s1 + $0x498] sm:$0xff]
    %v197 = vld [vmem:[%s1 + $0x4a0] sm:$0xff]
    %v198 = vld [vmem:[%s1 + $0x4a8] sm:$0xff]
    %v199 = vld [vmem:[%s1 + $0x4b0] sm:$0xff]
    %v200 = vld [vmem:[%s1 + $0x4b8] sm:$0xff]
    %v201 = vld [vmem:[%s1 + $0x4c0] sm:$0xff]
    %v202 = vld [vmem:[%s1 + $0x4c8] sm:$0xff]
    %v203 = vld [vmem:[%s1 + $0x4d0] sm:$0xff]
    %v204 = vld [vmem:[%s1 + $0x4d8] sm:$0xff]
    %v205 = vld [vmem:[%s1 + $0x4e0] sm:$0xff]
    %v206 = vld [vmem:[%s1 + $0x4e8] sm:$0xff]
    %v207 = vld [vmem:[%s1 + $0x4f0] sm:$0xff]
    %v208 = vld [vmem:[%s1 + $0x4f8] sm:$0xff]
    %v209 = vld [vmem:[%s1 + $0x500] sm:$0xff]
    %v210 = vld [vmem:[%s1 + $0x508] sm:$0xff]
    %v211 = vld [vmem:[%s1 + $0x510] sm:$0xff]
    %v212 = vld [vmem:[%s1 + $0x518] sm:$0xff]
    %v213 = vld [vmem:[%s1 + $0x520] sm:$0xff]
    %v214 = vld [vmem:[%s1 + $0x528] sm:$0xff]
    %v215 = vld [vmem:[%s1 + $0x530] sm:$0xff]
    %v216 = vld [vmem:[%s1 + $0x538] sm:$0xff]
    %v217 = vld [vmem:[%s1 + $0x540] sm:$0xff]
    %v218 = vld [vmem:[%s1 + $0x548] sm:$0xff]
    %v219 = vld [vmem:[%s1 + $0x550] sm:$0xff]
    %v220 = vld [vmem:[%s1 + $0x558] sm:$0xff]
    %v221 = vld [vmem:[%s1 + $0x560] sm:$0xff]
    %v222 = vld [vmem:[%s1 + $0x568] sm:$0xff]
    %v223 = vld [vmem:[%s1 + $0x570] sm:$0xff]
    %v224 = vld [vmem:[%s1 + $0x578] sm:$0xff]
    %v225 = vld [vmem:[%s1 + $0x580] sm:$0xff]
    %v226 = vld [vmem:[%s1 + $0x588] sm:$0xff]
    %v227 = vld [vmem:[%s1 + $0x590] sm:$0xff]
    %v228 = vld [vmem:[%s1 + $0x598] sm:$0xff]
    %v229 = vld [vmem:[%s1 + $0x5a0] sm:$0xff]
    %v230 = vld [vmem:[%s1 + $0x5a8] sm:$0xff]
    %v231 = vld [vmem:[%s1 + $0x5b0] sm:$0xff]
    %v232 = vld [vmem:[%s1 + $0x5b8] sm:$0xff]
    %v233 = vld [vmem:[%s1 + $0x5c0] sm:$0xff]
    %v234 = vld [vmem:[%s1 + $0x5c8] sm:$0xff]
    %v235 = vld [vmem:[%s1 + $0x5d0] sm:$0xff]
    %v236 = vld [vmem:[%s1 + $0x5d8] sm:$0xff]
    %v237 = vld [vmem:[%s1 + $0x5e0] sm:$0xff]
    %v238 = vld [vmem:[%s1 + $0x5e8] sm:$0xff]
    %v239 = vld [vmem:[%s1 + $0x5f0] sm:$0xff]
    %v240 = vld [vmem:[%s1 + $0x5f8] sm:$0xff]
    %v241 = vld [vmem:[%s1 + $0x600] sm:$0xff]
    %v242 = vld [vmem:[%s1 + $0x608] sm:$0xff]
    %v243 = vld [vmem:[%s1 + $0x610] sm:$0xff]
    %v244 = vld [vmem:[%s1 + $0x618] sm:$0xff]
    %v245 = vld [vmem:[%s2] sm:$0xf]
    %v247 = vlaneseq
    %v248 = vshrl.u32 %v247, 7
    %v249 = vsub.s32 0, %v248
    %v250 = vrot.slane %v245, %v249
    %v251 = vlaneseq
    %v252 = vshrl.u32 %v251, 7
    %v253 = vsub.s32 1, %v252
    %v254 = vrot.slane %v245, %v253
    %v255 = vlaneseq
    %v256 = vshrl.u32 %v255, 7
    %v257 = vsub.s32 2, %v256
    %v258 = vrot.slane %v245, %v257
    %v259 = vlaneseq
    %v260 = vshrl.u32 %v259, 7
    %v261 = vsub.s32 3, %v260
    %v262 = vrot.slane %v245, %v261
    %v463 = vunpack.c.l.b16 %v49
    %v464 = vunpack.c.h.b16 %v49
    %v465 = vunpack.c.l.b16 %v50
    %v466 = vunpack.c.h.b16 %v50
    %v467 = vunpack.c.l.b16 %v51
    %v468 = vunpack.c.h.b16 %v51
    %v469 = vunpack.c.l.b16 %v52
    %v470 = vunpack.c.h.b16 %v52
    %v471 = vunpack.c.l.b16 %v53
    %v472 = vunpack.c.h.b16 %v53
    %v473 = vunpack.c.l.b16 %v54
    %v474 = vunpack.c.h.b16 %v54
    %v475 = vunpack.c.l.b16 %v55
    %v476 = vunpack.c.h.b16 %v55
    %v477 = vunpack.c.l.b16 %v56
    %v478 = vunpack.c.h.b16 %v56
    %v479 = vunpack.c.l.b16 %v57
    %v480 = vunpack.c.h.b16 %v57
    %v481 = vunpack.c.l.b16 %v58
    %v482 = vunpack.c.h.b16 %v58
    %v483 = vunpack.c.l.b16 %v59
    %v484 = vunpack.c.h.b16 %v59
    %v485 = vunpack.c.l.b16 %v60
    %v486 = vunpack.c.h.b16 %v60
    %v487 = vunpack.c.l.b16 %v61
    %v488 = vunpack.c.h.b16 %v61
    %v489 = vunpack.c.l.b16 %v62
    %v490 = vunpack.c.h.b16 %v62
    %v491 = vunpack.c.l.b16 %v63
    %v492 = vunpack.c.h.b16 %v63
    %v493 = vunpack.c.l.b16 %v64
    %v494 = vunpack.c.h.b16 %v64
    %v495 = vunpack.c.l.b16 %v65
    %v496 = vunpack.c.h.b16 %v65
    %v497 = vunpack.c.l.b16 %v66
    %v498 = vunpack.c.h.b16 %v66
    %v499 = vunpack.c.l.b16 %v67
    %v500 = vunpack.c.h.b16 %v67
    %v501 = vunpack.c.l.b16 %v68
    %v502 = vunpack.c.h.b16 %v68
    %v503 = vunpack.c.l.b16 %v69
    %v504 = vunpack.c.h.b16 %v69
    %v505 = vunpack.c.l.b16 %v70
    %v506 = vunpack.c.h.b16 %v70
    %v507 = vunpack.c.l.b16 %v71
    %v508 = vunpack.c.h.b16 %v71
    %v509 = vunpack.c.l.b16 %v72
    %v510 = vunpack.c.h.b16 %v72
    %v511 = vunpack.c.l.b16 %v73
    %v512 = vunpack.c.h.b16 %v73
    %v513 = vunpack.c.l.b16 %v74
    %v514 = vunpack.c.h.b16 %v74
    %v515 = vunpack.c.l.b16 %v75
    %v516 = vunpack.c.h.b16 %v75
    %v517 = vunpack.c.l.b16 %v76
    %v518 = vunpack.c.h.b16 %v76
    %v519 = vunpack.c.l.b16 %v77
    %v520 = vunpack.c.h.b16 %v77
    %v521 = vunpack.c.l.b16 %v78
    %v522 = vunpack.c.h.b16 %v78
    %v523 = vunpack.c.l.b16 %v79
    %v524 = vunpack.c.h.b16 %v79
    %v525 = vunpack.c.l.b16 %v80
    %v526 = vunpack.c.h.b16 %v80
    %v527 = vunpack.c.l.b16 %v81
    %v528 = vunpack.c.h.b16 %v81
    %v529 = vunpack.c.l.b16 %v82
    %v530 = vunpack.c.h.b16 %v82
    %v531 = vunpack.c.l.b16 %v83
    %v532 = vunpack.c.h.b16 %v83
    %v533 = vunpack.c.l.b16 %v84
    %v534 = vunpack.c.h.b16 %v84
    %v535 = vunpack.c.l.b16 %v85
    %v536 = vunpack.c.h.b16 %v85
    %v537 = vunpack.c.l.b16 %v86
    %v538 = vunpack.c.h.b16 %v86
    %v539 = vunpack.c.l.b16 %v87
    %v540 = vunpack.c.h.b16 %v87
    %v541 = vunpack.c.l.b16 %v88
    %v542 = vunpack.c.h.b16 %v88
    %v543 = vunpack.c.l.b16 %v89
    %v544 = vunpack.c.h.b16 %v89
    %v545 = vunpack.c.l.b16 %v90
    %v546 = vunpack.c.h.b16 %v90
    %v547 = vunpack.c.l.b16 %v91
    %v548 = vunpack.c.h.b16 %v91
    %v549 = vunpack.c.l.b16 %v92
    %v550 = vunpack.c.h.b16 %v92
    %v551 = vunpack.c.l.b16 %v93
    %v552 = vunpack.c.h.b16 %v93
    %v553 = vunpack.c.l.b16 %v94
    %v554 = vunpack.c.h.b16 %v94
    %v555 = vunpack.c.l.b16 %v95
    %v556 = vunpack.c.h.b16 %v95
    %v557 = vunpack.c.l.b16 %v96
    %v558 = vunpack.c.h.b16 %v96
    %v559 = vunpack.c.l.b16 %v97
    %v560 = vunpack.c.h.b16 %v97
    %v561 = vunpack.c.l.b16 %v98
    %v562 = vunpack.c.h.b16 %v98
    %v563 = vunpack.c.l.b16 %v99
    %v564 = vunpack.c.h.b16 %v99
    %v565 = vunpack.c.l.b16 %v100
    %v566 = vunpack.c.h.b16 %v100
    %v567 = vunpack.c.l.b16 %v101
    %v568 = vunpack.c.h.b16 %v101
    %v569 = vunpack.c.l.b16 %v102
    %v570 = vunpack.c.h.b16 %v102
    %v571 = vunpack.c.l.b16 %v103
    %v572 = vunpack.c.h.b16 %v103
    %v573 = vunpack.c.l.b16 %v104
    %v574 = vunpack.c.h.b16 %v104
    %v575 = vunpack.c.l.b16 %v105
    %v576 = vunpack.c.h.b16 %v105
    %v577 = vunpack.c.l.b16 %v106
    %v578 = vunpack.c.h.b16 %v106
    %v579 = vunpack.c.l.b16 %v107
    %v580 = vunpack.c.h.b16 %v107
    %v581 = vunpack.c.l.b16 %v108
    %v582 = vunpack.c.h.b16 %v108
    %v583 = vunpack.c.l.b16 %v109
    %v584 = vunpack.c.h.b16 %v109
    %v585 = vunpack.c.l.b16 %v110
    %v586 = vunpack.c.h.b16 %v110
    %v587 = vunpack.c.l.b16 %v111
    %v588 = vunpack.c.h.b16 %v111
    %v589 = vunpack.c.l.b16 %v112
    %v590 = vunpack.c.h.b16 %v112
    %v591 = vunpack.c.l.b16 %v113
    %v592 = vunpack.c.h.b16 %v113
    %v593 = vunpack.c.l.b16 %v114
    %v594 = vunpack.c.h.b16 %v114
    %v595 = vunpack.c.l.b16 %v115
    %v596 = vunpack.c.h.b16 %v115
    %v597 = vunpack.c.l.b16 %v116
    %v598 = vunpack.c.h.b16 %v116
    %v599 = vunpack.c.l.b16 %v117
    %v600 = vunpack.c.h.b16 %v117
    %v601 = vunpack.c.l.b16 %v118
    %v602 = vunpack.c.h.b16 %v118
    %v603 = vunpack.c.l.b16 %v119
    %v604 = vunpack.c.h.b16 %v119
    %v605 = vunpack.c.l.b16 %v120
    %v606 = vunpack.c.h.b16 %v120
    %v607 = vunpack.c.l.b16 %v121
    %v608 = vunpack.c.h.b16 %v121
    %v609 = vunpack.c.l.b16 %v122
    %v610 = vunpack.c.h.b16 %v122
    %v611 = vunpack.c.l.b16 %v123
    %v612 = vunpack.c.h.b16 %v123
    %v613 = vunpack.c.l.b16 %v124
    %v614 = vunpack.c.h.b16 %v124
    %v615 = vunpack.c.l.b16 %v125
    %v616 = vunpack.c.h.b16 %v125
    %v617 = vunpack.c.l.b16 %v126
    %v618 = vunpack.c.h.b16 %v126
    %v619 = vunpack.c.l.b16 %v127
    %v620 = vunpack.c.h.b16 %v127
    %v621 = vunpack.c.l.b16 %v128
    %v622 = vunpack.c.h.b16 %v128
    %v623 = vunpack.c.l.b16 %v129
    %v624 = vunpack.c.h.b16 %v129
    %v625 = vunpack.c.l.b16 %v130
    %v626 = vunpack.c.h.b16 %v130
    %v627 = vunpack.c.l.b16 %v131
    %v628 = vunpack.c.h.b16 %v131
    %v629 = vunpack.c.l.b16 %v132
    %v630 = vunpack.c.h.b16 %v132
    %v631 = vunpack.c.l.b16 %v133
    %v632 = vunpack.c.h.b16 %v133
    %v633 = vunpack.c.l.b16 %v134
    %v634 = vunpack.c.h.b16 %v134
    %v635 = vunpack.c.l.b16 %v135
    %v636 = vunpack.c.h.b16 %v135
    %v637 = vunpack.c.l.b16 %v136
    %v638 = vunpack.c.h.b16 %v136
    %v639 = vunpack.c.l.b16 %v137
    %v640 = vunpack.c.h.b16 %v137
    %v641 = vunpack.c.l.b16 %v138
    %v642 = vunpack.c.h.b16 %v138
    %v643 = vunpack.c.l.b16 %v139
    %v644 = vunpack.c.h.b16 %v139
    %v645 = vunpack.c.l.b16 %v140
    %v646 = vunpack.c.h.b16 %v140
    %v647 = vunpack.c.l.b16 %v141
    %v648 = vunpack.c.h.b16 %v141
    %v649 = vunpack.c.l.b16 %v142
    %v650 = vunpack.c.h.b16 %v142
    %v651 = vunpack.c.l.b16 %v143
    %v652 = vunpack.c.h.b16 %v143
    %v653 = vunpack.c.l.b16 %v144
    %v654 = vunpack.c.h.b16 %v144
    %v655 = vunpack.c.l.b16 %v145
    %v656 = vunpack.c.h.b16 %v145
    %v657 = vunpack.c.l.b16 %v146
    %v658 = vunpack.c.h.b16 %v146
    %v659 = vunpack.c.l.b16 %v147
    %v660 = vunpack.c.h.b16 %v147
    %v661 = vunpack.c.l.b16 %v148
    %v662 = vunpack.c.h.b16 %v148
    %v663 = vunpack.c.l.b16 %v149
    %v664 = vunpack.c.h.b16 %v149
    %v665 = vunpack.c.l.b16 %v150
    %v666 = vunpack.c.h.b16 %v150
    %v667 = vunpack.c.l.b16 %v151
    %v668 = vunpack.c.h.b16 %v151
    %v669 = vunpack.c.l.b16 %v152
    %v670 = vunpack.c.h.b16 %v152
    %v671 = vunpack.c.l.b16 %v153
    %v672 = vunpack.c.h.b16 %v153
    %v673 = vunpack.c.l.b16 %v154
    %v674 = vunpack.c.h.b16 %v154
    %v675 = vunpack.c.l.b16 %v155
    %v676 = vunpack.c.h.b16 %v155
    %v677 = vunpack.c.l.b16 %v156
    %v678 = vunpack.c.h.b16 %v156
    %v679 = vunpack.c.l.b16 %v157
    %v680 = vunpack.c.h.b16 %v157
    %v681 = vunpack.c.l.b16 %v158
    %v682 = vunpack.c.h.b16 %v158
    %v683 = vunpack.c.l.b16 %v159
    %v684 = vunpack.c.h.b16 %v159
    %v685 = vunpack.c.l.b16 %v160
    %v686 = vunpack.c.h.b16 %v160
    %v687 = vunpack.c.l.b16 %v161
    %v688 = vunpack.c.h.b16 %v161
    %v689 = vunpack.c.l.b16 %v162
    %v690 = vunpack.c.h.b16 %v162
    %v691 = vunpack.c.l.b16 %v163
    %v692 = vunpack.c.h.b16 %v163
    %v693 = vunpack.c.l.b16 %v164
    %v694 = vunpack.c.h.b16 %v164
    %v695 = vunpack.c.l.b16 %v165
    %v696 = vunpack.c.h.b16 %v165
    %v697 = vunpack.c.l.b16 %v166
    %v698 = vunpack.c.h.b16 %v166
    %v699 = vunpack.c.l.b16 %v167
    %v700 = vunpack.c.h.b16 %v167
    %v701 = vunpack.c.l.b16 %v168
    %v702 = vunpack.c.h.b16 %v168
    %v703 = vunpack.c.l.b16 %v169
    %v704 = vunpack.c.h.b16 %v169
    %v705 = vunpack.c.l.b16 %v170
    %v706 = vunpack.c.h.b16 %v170
    %v707 = vunpack.c.l.b16 %v171
    %v708 = vunpack.c.h.b16 %v171
    %v709 = vunpack.c.l.b16 %v172
    %v710 = vunpack.c.h.b16 %v172
    %v711 = vunpack.c.l.b16 %v173
    %v712 = vunpack.c.h.b16 %v173
    %v713 = vunpack.c.l.b16 %v174
    %v714 = vunpack.c.h.b16 %v174
    %v715 = vunpack.c.l.b16 %v175
    %v716 = vunpack.c.h.b16 %v175
    %v717 = vunpack.c.l.b16 %v176
    %v718 = vunpack.c.h.b16 %v176
    %v719 = vunpack.c.l.b16 %v177
    %v720 = vunpack.c.h.b16 %v177
    %v721 = vunpack.c.l.b16 %v178
    %v722 = vunpack.c.h.b16 %v178
    %v723 = vunpack.c.l.b16 %v179
    %v724 = vunpack.c.h.b16 %v179
    %v725 = vunpack.c.l.b16 %v180
    %v726 = vunpack.c.h.b16 %v180
    %v727 = vunpack.c.l.b16 %v181
    %v728 = vunpack.c.h.b16 %v181
    %v729 = vunpack.c.l.b16 %v182
    %v730 = vunpack.c.h.b16 %v182
    %v731 = vunpack.c.l.b16 %v183
    %v732 = vunpack.c.h.b16 %v183
    %v733 = vunpack.c.l.b16 %v184
    %v734 = vunpack.c.h.b16 %v184
    %v735 = vunpack.c.l.b16 %v185
    %v736 = vunpack.c.h.b16 %v185
    %v737 = vunpack.c.l.b16 %v186
    %v738 = vunpack.c.h.b16 %v186
    %v739 = vunpack.c.l.b16 %v187
    %v740 = vunpack.c.h.b16 %v187
    %v741 = vunpack.c.l.b16 %v188
    %v742 = vunpack.c.h.b16 %v188
    %v743 = vunpack.c.l.b16 %v189
    %v744 = vunpack.c.h.b16 %v189
    %v745 = vunpack.c.l.b16 %v190
    %v746 = vunpack.c.h.b16 %v190
    %v747 = vunpack.c.l.b16 %v191
    %v748 = vunpack.c.h.b16 %v191
    %v749 = vunpack.c.l.b16 %v192
    %v750 = vunpack.c.h.b16 %v192
    %v751 = vunpack.c.l.b16 %v193
    %v752 = vunpack.c.h.b16 %v193
    %v753 = vunpack.c.l.b16 %v194
    %v754 = vunpack.c.h.b16 %v194
    %v755 = vunpack.c.l.b16 %v195
    %v756 = vunpack.c.h.b16 %v195
    %v757 = vunpack.c.l.b16 %v196
    %v758 = vunpack.c.h.b16 %v196
    %v759 = vunpack.c.l.b16 %v197
    %v760 = vunpack.c.h.b16 %v197
    %v761 = vunpack.c.l.b16 %v198
    %v762 = vunpack.c.h.b16 %v198
    %v763 = vunpack.c.l.b16 %v199
    %v764 = vunpack.c.h.b16 %v199
    %v765 = vunpack.c.l.b16 %v200
    %v766 = vunpack.c.h.b16 %v200
    %v767 = vunpack.c.l.b16 %v201
    %v768 = vunpack.c.h.b16 %v201
    %v769 = vunpack.c.l.b16 %v202
    %v770 = vunpack.c.h.b16 %v202
    %v771 = vunpack.c.l.b16 %v203
    %v772 = vunpack.c.h.b16 %v203
    %v773 = vunpack.c.l.b16 %v204
    %v774 = vunpack.c.h.b16 %v204
    %v775 = vunpack.c.l.b16 %v205
    %v776 = vunpack.c.h.b16 %v205
    %v777 = vunpack.c.l.b16 %v206
    %v778 = vunpack.c.h.b16 %v206
    %v779 = vunpack.c.l.b16 %v207
    %v780 = vunpack.c.h.b16 %v207
    %v781 = vunpack.c.l.b16 %v208
    %v782 = vunpack.c.h.b16 %v208
    %v783 = vunpack.c.l.b16 %v209
    %v784 = vunpack.c.h.b16 %v209
    %v785 = vunpack.c.l.b16 %v210
    %v786 = vunpack.c.h.b16 %v210
    %v787 = vunpack.c.l.b16 %v211
    %v788 = vunpack.c.h.b16 %v211
    %v789 = vunpack.c.l.b16 %v212
    %v790 = vunpack.c.h.b16 %v212
    %v791 = vunpack.c.l.b16 %v213
    %v792 = vunpack.c.h.b16 %v213
    %v793 = vunpack.c.l.b16 %v214
    %v794 = vunpack.c.h.b16 %v214
    %v795 = vunpack.c.l.b16 %v215
    %v796 = vunpack.c.h.b16 %v215
    %v797 = vunpack.c.l.b16 %v216
    %v798 = vunpack.c.h.b16 %v216
    %v799 = vunpack.c.l.b16 %v217
    %v800 = vunpack.c.h.b16 %v217
    %v801 = vunpack.c.l.b16 %v218
    %v802 = vunpack.c.h.b16 %v218
    %v803 = vunpack.c.l.b16 %v219
    %v804 = vunpack.c.h.b16 %v219
    %v805 = vunpack.c.l.b16 %v220
    %v806 = vunpack.c.h.b16 %v220
    %v807 = vunpack.c.l.b16 %v221
    %v808 = vunpack.c.h.b16 %v221
    %v809 = vunpack.c.l.b16 %v222
    %v810 = vunpack.c.h.b16 %v222
    %v811 = vunpack.c.l.b16 %v223
    %v812 = vunpack.c.h.b16 %v223
    %v813 = vunpack.c.l.b16 %v224
    %v814 = vunpack.c.h.b16 %v224
    %v815 = vunpack.c.l.b16 %v225
    %v816 = vunpack.c.h.b16 %v225
    %v817 = vunpack.c.l.b16 %v226
    %v818 = vunpack.c.h.b16 %v226
    %v819 = vunpack.c.l.b16 %v227
    %v820 = vunpack.c.h.b16 %v227
    %v821 = vunpack.c.l.b16 %v228
    %v822 = vunpack.c.h.b16 %v228
    %v823 = vunpack.c.l.b16 %v229
    %v824 = vunpack.c.h.b16 %v229
    %v825 = vunpack.c.l.b16 %v230
    %v826 = vunpack.c.h.b16 %v230
    %v827 = vunpack.c.l.b16 %v231
    %v828 = vunpack.c.h.b16 %v231
    %v829 = vunpack.c.l.b16 %v232
    %v830 = vunpack.c.h.b16 %v232
    %v831 = vunpack.c.l.b16 %v233
    %v832 = vunpack.c.h.b16 %v233
    %v833 = vunpack.c.l.b16 %v234
    %v834 = vunpack.c.h.b16 %v234
    %v835 = vunpack.c.l.b16 %v235
    %v836 = vunpack.c.h.b16 %v235
    %v837 = vunpack.c.l.b16 %v236
    %v838 = vunpack.c.h.b16 %v236
    %v839 = vunpack.c.l.b16 %v237
    %v840 = vunpack.c.h.b16 %v237
    %v841 = vunpack.c.l.b16 %v238
    %v842 = vunpack.c.h.b16 %v238
    %v843 = vunpack.c.l.b16 %v239
    %v844 = vunpack.c.h.b16 %v239
    %v845 = vunpack.c.l.b16 %v240
    %v846 = vunpack.c.h.b16 %v240
    %v847 = vunpack.c.l.b16 %v241
    %v848 = vunpack.c.h.b16 %v241
    %v849 = vunpack.c.l.b16 %v242
    %v850 = vunpack.c.h.b16 %v242
    %v851 = vunpack.c.l.b16 %v243
    %v852 = vunpack.c.h.b16 %v243
    %v853 = vunpack.c.l.b16 %v244
    %v854 = vunpack.c.h.b16 %v244
    %v855 = vpack.c.b16 %v467, %v463
    %v856 = vpack.c.b16 %v468, %v464
    %v857 = vpack.c.b16 %v469, %v465
    %v858 = vpack.c.b16 %v470, %v466
    %v859 = vpack.c.b16 %v475, %v471
    %v860 = vpack.c.b16 %v476, %v472
    %v861 = vpack.c.b16 %v477, %v473
    %v862 = vpack.c.b16 %v478, %v474
    %v863 = vpack.c.b16 %v483, %v479
    %v864 = vpack.c.b16 %v484, %v480
    %v865 = vpack.c.b16 %v485, %v481
    %v866 = vpack.c.b16 %v486, %v482
    %v867 = vpack.c.b16 %v491, %v487
    %v868 = vpack.c.b16 %v492, %v488
    %v869 = vpack.c.b16 %v493, %v489
    %v870 = vpack.c.b16 %v494, %v490
    %v871 = vpack.c.b16 %v499, %v495
    %v872 = vpack.c.b16 %v500, %v496
    %v873 = vpack.c.b16 %v501, %v497
    %v874 = vpack.c.b16 %v502, %v498
    %v875 = vpack.c.b16 %v507, %v503
    %v876 = vpack.c.b16 %v508, %v504
    %v877 = vpack.c.b16 %v509, %v505
    %v878 = vpack.c.b16 %v510, %v506
    %v879 = vpack.c.b16 %v515, %v511
    %v880 = vpack.c.b16 %v516, %v512
    %v881 = vpack.c.b16 %v517, %v513
    %v882 = vpack.c.b16 %v518, %v514
    %v883 = vpack.c.b16 %v523, %v519
    %v884 = vpack.c.b16 %v524, %v520
    %v885 = vpack.c.b16 %v525, %v521
    %v886 = vpack.c.b16 %v526, %v522
    %v887 = vpack.c.b16 %v531, %v527
    %v888 = vpack.c.b16 %v532, %v528
    %v889 = vpack.c.b16 %v533, %v529
    %v890 = vpack.c.b16 %v534, %v530
    %v891 = vpack.c.b16 %v539, %v535
    %v892 = vpack.c.b16 %v540, %v536
    %v893 = vpack.c.b16 %v541, %v537
    %v894 = vpack.c.b16 %v542, %v538
    %v895 = vpack.c.b16 %v547, %v543
    %v896 = vpack.c.b16 %v548, %v544
    %v897 = vpack.c.b16 %v549, %v545
    %v898 = vpack.c.b16 %v550, %v546
    %v899 = vpack.c.b16 %v555, %v551
    %v900 = vpack.c.b16 %v556, %v552
    %v901 = vpack.c.b16 %v557, %v553
    %v902 = vpack.c.b16 %v558, %v554
    %v903 = vpack.c.b16 %v563, %v559
    %v904 = vpack.c.b16 %v564, %v560
    %v905 = vpack.c.b16 %v565, %v561
    %v906 = vpack.c.b16 %v566, %v562
    %v907 = vpack.c.b16 %v571, %v567
    %v908 = vpack.c.b16 %v572, %v568
    %v909 = vpack.c.b16 %v573, %v569
    %v910 = vpack.c.b16 %v574, %v570
    %v911 = vpack.c.b16 %v579, %v575
    %v912 = vpack.c.b16 %v580, %v576
    %v913 = vpack.c.b16 %v581, %v577
    %v914 = vpack.c.b16 %v582, %v578
    %v915 = vpack.c.b16 %v587, %v583
    %v916 = vpack.c.b16 %v588, %v584
    %v917 = vpack.c.b16 %v589, %v585
    %v918 = vpack.c.b16 %v590, %v586
    %v919 = vpack.c.b16 %v595, %v591
    %v920 = vpack.c.b16 %v596, %v592
    %v921 = vpack.c.b16 %v597, %v593
    %v922 = vpack.c.b16 %v598, %v594
    %v923 = vpack.c.b16 %v603, %v599
    %v924 = vpack.c.b16 %v604, %v600
    %v925 = vpack.c.b16 %v605, %v601
    %v926 = vpack.c.b16 %v606, %v602
    %v927 = vpack.c.b16 %v611, %v607
    %v928 = vpack.c.b16 %v612, %v608
    %v929 = vpack.c.b16 %v613, %v609
    %v930 = vpack.c.b16 %v614, %v610
    %v931 = vpack.c.b16 %v619, %v615
    %v932 = vpack.c.b16 %v620, %v616
    %v933 = vpack.c.b16 %v621, %v617
    %v934 = vpack.c.b16 %v622, %v618
    %v935 = vpack.c.b16 %v627, %v623
    %v936 = vpack.c.b16 %v628, %v624
    %v937 = vpack.c.b16 %v629, %v625
    %v938 = vpack.c.b16 %v630, %v626
    %v939 = vpack.c.b16 %v635, %v631
    %v940 = vpack.c.b16 %v636, %v632
    %v941 = vpack.c.b16 %v637, %v633
    %v942 = vpack.c.b16 %v638, %v634
    %v943 = vpack.c.b16 %v643, %v639
    %v944 = vpack.c.b16 %v644, %v640
    %v945 = vpack.c.b16 %v645, %v641
    %v946 = vpack.c.b16 %v646, %v642
    %v947 = vpack.c.b16 %v651, %v647
    %v948 = vpack.c.b16 %v652, %v648
    %v949 = vpack.c.b16 %v653, %v649
    %v950 = vpack.c.b16 %v654, %v650
    %v951 = vpack.c.b16 %v659, %v655
    %v952 = vpack.c.b16 %v660, %v656
    %v953 = vpack.c.b16 %v661, %v657
    %v954 = vpack.c.b16 %v662, %v658
    %v955 = vpack.c.b16 %v667, %v663
    %v956 = vpack.c.b16 %v668, %v664
    %v957 = vpack.c.b16 %v669, %v665
    %v958 = vpack.c.b16 %v670, %v666
    %v959 = vpack.c.b16 %v675, %v671
    %v960 = vpack.c.b16 %v676, %v672
    %v961 = vpack.c.b16 %v677, %v673
    %v962 = vpack.c.b16 %v678, %v674
    %v963 = vpack.c.b16 %v683, %v679
    %v964 = vpack.c.b16 %v684, %v680
    %v965 = vpack.c.b16 %v685, %v681
    %v966 = vpack.c.b16 %v686, %v682
    %v967 = vpack.c.b16 %v691, %v687
    %v968 = vpack.c.b16 %v692, %v688
    %v969 = vpack.c.b16 %v693, %v689
    %v970 = vpack.c.b16 %v694, %v690
    %v971 = vpack.c.b16 %v699, %v695
    %v972 = vpack.c.b16 %v700, %v696
    %v973 = vpack.c.b16 %v701, %v697
    %v974 = vpack.c.b16 %v702, %v698
    %v975 = vpack.c.b16 %v707, %v703
    %v976 = vpack.c.b16 %v708, %v704
    %v977 = vpack.c.b16 %v709, %v705
    %v978 = vpack.c.b16 %v710, %v706
    %v979 = vpack.c.b16 %v715, %v711
    %v980 = vpack.c.b16 %v716, %v712
    %v981 = vpack.c.b16 %v717, %v713
    %v982 = vpack.c.b16 %v718, %v714
    %v983 = vpack.c.b16 %v723, %v719
    %v984 = vpack.c.b16 %v724, %v720
    %v985 = vpack.c.b16 %v725, %v721
    %v986 = vpack.c.b16 %v726, %v722
    %v987 = vpack.c.b16 %v731, %v727
    %v988 = vpack.c.b16 %v732, %v728
    %v989 = vpack.c.b16 %v733, %v729
    %v990 = vpack.c.b16 %v734, %v730
    %v991 = vpack.c.b16 %v739, %v735
    %v992 = vpack.c.b16 %v740, %v736
    %v993 = vpack.c.b16 %v741, %v737
    %v994 = vpack.c.b16 %v742, %v738
    %v995 = vpack.c.b16 %v747, %v743
    %v996 = vpack.c.b16 %v748, %v744
    %v997 = vpack.c.b16 %v749, %v745
    %v998 = vpack.c.b16 %v750, %v746
    %v999 = vpack.c.b16 %v755, %v751
    %v1000 = vpack.c.b16 %v756, %v752
    %v1001 = vpack.c.b16 %v757, %v753
    %v1002 = vpack.c.b16 %v758, %v754
    %v1003 = vpack.c.b16 %v763, %v759
    %v1004 = vpack.c.b16 %v764, %v760
    %v1005 = vpack.c.b16 %v765, %v761
    %v1006 = vpack.c.b16 %v766, %v762
    %v1007 = vpack.c.b16 %v771, %v767
    %v1008 = vpack.c.b16 %v772, %v768
    %v1009 = vpack.c.b16 %v773, %v769
    %v1010 = vpack.c.b16 %v774, %v770
    %v1011 = vpack.c.b16 %v779, %v775
    %v1012 = vpack.c.b16 %v780, %v776
    %v1013 = vpack.c.b16 %v781, %v777
    %v1014 = vpack.c.b16 %v782, %v778
    %v1015 = vpack.c.b16 %v787, %v783
    %v1016 = vpack.c.b16 %v788, %v784
    %v1017 = vpack.c.b16 %v789, %v785
    %v1018 = vpack.c.b16 %v790, %v786
    %v1019 = vpack.c.b16 %v795, %v791
    %v1020 = vpack.c.b16 %v796, %v792
    %v1021 = vpack.c.b16 %v797, %v793
    %v1022 = vpack.c.b16 %v798, %v794
    %v1023 = vpack.c.b16 %v803, %v799
    %v1024 = vpack.c.b16 %v804, %v800
    %v1025 = vpack.c.b16 %v805, %v801
    %v1026 = vpack.c.b16 %v806, %v802
    %v1027 = vpack.c.b16 %v811, %v807
    %v1028 = vpack.c.b16 %v812, %v808
    %v1029 = vpack.c.b16 %v813, %v809
    %v1030 = vpack.c.b16 %v814, %v810
    %v1031 = vpack.c.b16 %v819, %v815
    %v1032 = vpack.c.b16 %v820, %v816
    %v1033 = vpack.c.b16 %v821, %v817
    %v1034 = vpack.c.b16 %v822, %v818
    %v1035 = vpack.c.b16 %v827, %v823
    %v1036 = vpack.c.b16 %v828, %v824
    %v1037 = vpack.c.b16 %v829, %v825
    %v1038 = vpack.c.b16 %v830, %v826
    %v1039 = vpack.c.b16 %v835, %v831
    %v1040 = vpack.c.b16 %v836, %v832
    %v1041 = vpack.c.b16 %v837, %v833
    %v1042 = vpack.c.b16 %v838, %v834
    %v1043 = vpack.c.b16 %v843, %v839
    %v1044 = vpack.c.b16 %v844, %v840
    %v1045 = vpack.c.b16 %v845, %v841
    %v1046 = vpack.c.b16 %v846, %v842
    %v1047 = vpack.c.b16 %v851, %v847
    %v1048 = vpack.c.b16 %v852, %v848
    %v1049 = vpack.c.b16 %v853, %v849
    %v1050 = vpack.c.b16 %v854, %v850
    %vm1247 = vcmask 130048
    %v1249 = vsel %vm1247, %v48, 0
    %1251 = vmatprep.subr.bf16.mxu0 %v856
    %1252 = vmatpush1.bf16.msra.mxu0 %v855
    %1253 = vmatprep.subr.bf16.mxu0 %v860
    %1254 = vmatpush1.bf16.msra.mxu0 %v859
    %1255 = vmatprep.subr.bf16.mxu0 %v864
    %1256 = vmatpush1.bf16.msra.mxu0 %v863
    %1257 = vmatprep.subr.bf16.mxu0 %v868
    %1258 = vmatpush1.bf16.msra.mxu0 %v867
    %1259 = vmatprep.subr.bf16.mxu0 %v872
    %1260 = vmatpush1.bf16.msra.mxu0 %v871
    %1261 = vmatprep.subr.bf16.mxu0 %v876
    %1262 = vmatpush1.bf16.msra.mxu0 %v875
    %1263 = vmatprep.subr.bf16.mxu0 %v880
    %1264 = vmatpush1.bf16.msra.mxu0 %v879
    %1265 = vmatprep.subr.bf16.mxu0 %v884
    %1266 = vmatpush1.bf16.msra.mxu0 %v883
    %1267 = vmatprep.subr.bf16.mxu0 %v888
    %1268 = vmatpush1.bf16.msra.mxu0 %v887
    %1269 = vmatprep.subr.bf16.mxu0 %v892
    %1270 = vmatpush1.bf16.msra.mxu0 %v891
    %1271 = vmatprep.subr.bf16.mxu0 %v896
    %1272 = vmatpush1.bf16.msra.mxu0 %v895
    %1273 = vmatprep.subr.bf16.mxu0 %v900
    %1274 = vmatpush1.bf16.msra.mxu0 %v899
    %1275 = vmatprep.subr.bf16.mxu0 %v904
    %1276 = vmatpush1.bf16.msra.mxu0 %v903
    %1277 = vmatprep.subr.bf16.mxu0 %v908
    %1278 = vmatpush1.bf16.msra.mxu0 %v907
    %1279 = vmatprep.subr.bf16.mxu0 %v912
    %1280 = vmatpush1.bf16.msra.mxu0 %v911
    %1281 = vmatprep.subr.bf16.mxu0 %v916
    %1282 = vmatpush1.bf16.msra.mxu0 %v915
    %1283 = vmatprep.mubr.bf16.mxu0 %v43
    %1284 = vmatmul.mubr.bf16.gmra.mrb[0].mxu0 %v42
    %v1285 = vpop.f32.mrb[0].mxu0
    %v1286 = vadd.f32 %v250, %v1285
    %v1287 = vpop.f32.mrb[0].mxu0
    %v1288 = vadd.f32 %v254, %v1287
    %v1289 = vpop.f32.mrb[0].mxu0
    %v1290 = vadd.f32 %v250, %v1289
    %v1291 = vpop.f32.mrb[0].mxu0
    %v1292 = vadd.f32 %v254, %v1291
    %1293 = vdwg.mxu0
    %1294 = vmatprep.subr.bf16.mxu0 %v920
    %1295 = vmatpush1.bf16.msra.mxu0 %v919
    %1296 = vmatprep.subr.bf16.mxu0 %v924
    %1297 = vmatpush1.bf16.msra.mxu0 %v923
    %1298 = vmatprep.subr.bf16.mxu0 %v928
    %1299 = vmatpush1.bf16.msra.mxu0 %v927
    %1300 = vmatprep.subr.bf16.mxu0 %v932
    %1301 = vmatpush1.bf16.msra.mxu0 %v931
    %1302 = vmatprep.subr.bf16.mxu0 %v936
    %1303 = vmatpush1.bf16.msra.mxu0 %v935
    %1304 = vmatprep.subr.bf16.mxu0 %v940
    %1305 = vmatpush1.bf16.msra.mxu0 %v939
    %1306 = vmatprep.subr.bf16.mxu0 %v944
    %1307 = vmatpush1.bf16.msra.mxu0 %v943
    %1308 = vmatprep.subr.bf16.mxu0 %v948
    %1309 = vmatpush1.bf16.msra.mxu0 %v947
    %1310 = vmatprep.subr.bf16.mxu0 %v952
    %1311 = vmatpush1.bf16.msra.mxu0 %v951
    %1312 = vmatprep.subr.bf16.mxu0 %v956
    %1313 = vmatpush1.bf16.msra.mxu0 %v955
    %1314 = vmatprep.subr.bf16.mxu0 %v960
    %1315 = vmatpush1.bf16.msra.mxu0 %v959
    %1316 = vmatprep.subr.bf16.mxu0 %v964
    %1317 = vmatpush1.bf16.msra.mxu0 %v963
    %1318 = vmatprep.subr.bf16.mxu0 %v968
    %1319 = vmatpush1.bf16.msra.mxu0 %v967
    %1320 = vmatprep.subr.bf16.mxu0 %v972
    %1321 = vmatpush1.bf16.msra.mxu0 %v971
    %1322 = vmatprep.subr.bf16.mxu0 %v976
    %1323 = vmatpush1.bf16.msra.mxu0 %v975
    %1324 = vmatprep.subr.bf16.mxu0 %v980
    %1325 = vmatpush1.bf16.msra.mxu0 %v979
    %1326 = vmatprep.mubr.bf16.mxu0 %v45
    %1327 = vmatmul.mubr.bf16.gmra.mrb[0].mxu0 %v44
    %v1328 = vpop.f32.mrb[0].mxu0
    %v1329 = vadd.f32 %v1286, %v1328
    %v1330 = vpop.f32.mrb[0].mxu0
    %v1331 = vadd.f32 %v1288, %v1330
    %v1332 = vpop.f32.mrb[0].mxu0
    %v1333 = vadd.f32 %v1290, %v1332
    %v1334 = vpop.f32.mrb[0].mxu0
    %v1335 = vadd.f32 %v1292, %v1334
    %1336 = vdwg.mxu0
    %1337 = vmatprep.subr.bf16.mxu0 %v984
    %1338 = vmatpush1.bf16.msra.mxu0 %v983
    %1339 = vmatprep.subr.bf16.mxu0 %v988
    %1340 = vmatpush1.bf16.msra.mxu0 %v987
    %1341 = vmatprep.subr.bf16.mxu0 %v992
    %1342 = vmatpush1.bf16.msra.mxu0 %v991
    %1343 = vmatprep.subr.bf16.mxu0 %v996
    %1344 = vmatpush1.bf16.msra.mxu0 %v995
    %1345 = vmatprep.subr.bf16.mxu0 %v1000
    %1346 = vmatpush1.bf16.msra.mxu0 %v999
    %1347 = vmatprep.subr.bf16.mxu0 %v1004
    %1348 = vmatpush1.bf16.msra.mxu0 %v1003
    %1349 = vmatprep.subr.bf16.mxu0 %v1008
    %1350 = vmatpush1.bf16.msra.mxu0 %v1007
    %1351 = vmatprep.subr.bf16.mxu0 %v1012
    %1352 = vmatpush1.bf16.msra.mxu0 %v1011
    %1353 = vmatprep.subr.bf16.mxu0 %v1016
    %1354 = vmatpush1.bf16.msra.mxu0 %v1015
    %1355 = vmatprep.subr.bf16.mxu0 %v1020
    %1356 = vmatpush1.bf16.msra.mxu0 %v1019
    %1357 = vmatprep.subr.bf16.mxu0 %v1024
    %1358 = vmatpush1.bf16.msra.mxu0 %v1023
    %1359 = vmatprep.subr.bf16.mxu0 %v1028
    %1360 = vmatpush1.bf16.msra.mxu0 %v1027
    %1361 = vmatprep.subr.bf16.mxu0 %v1032
    %1362 = vmatpush1.bf16.msra.mxu0 %v1031
    %1363 = vmatprep.subr.bf16.mxu0 %v1036
    %1364 = vmatpush1.bf16.msra.mxu0 %v1035
    %1365 = vmatprep.subr.bf16.mxu0 %v1040
    %1366 = vmatpush1.bf16.msra.mxu0 %v1039
    %1367 = vmatprep.subr.bf16.mxu0 %v1044
    %1368 = vmatpush1.bf16.msra.mxu0 %v1043
    %1369 = vmatprep.mubr.bf16.mxu0 %v47
    %1370 = vmatmul.mubr.bf16.gmra.mrb[0].mxu0 %v46
    %v1371 = vpop.f32.mrb[0].mxu0
    %v1372 = vadd.f32 %v1329, %v1371
    %v1373 = vpop.f32.mrb[0].mxu0
    %v1374 = vadd.f32 %v1331, %v1373
    %v1375 = vpop.f32.mrb[0].mxu0
    %v1376 = vadd.f32 %v1333, %v1375
    %v1377 = vpop.f32.mrb[0].mxu0
    %v1378 = vadd.f32 %v1335, %v1377
    %1379 = vdwg.mxu0
    %1380 = vmatprep.subr.bf16.mxu0 %v1048
    %1381 = vmatpush1.bf16.msra.mxu0 %v1047
    %1382 = vmatprep.subr.bf16.mxu0 0
    %1383 = vmatpush1.bf16.msra.mxu0 0
    %1384 = vmatprep.subr.bf16.mxu0 0
    %1385 = vmatpush1.bf16.msra.mxu0 0
    %1386 = vmatprep.subr.bf16.mxu0 0
    %1387 = vmatpush1.bf16.msra.mxu0 0
    %1388 = vmatprep.subr.bf16.mxu0 0
    %1389 = vmatpush1.bf16.msra.mxu0 0
    %1390 = vmatprep.subr.bf16.mxu0 0
    %1391 = vmatpush1.bf16.msra.mxu0 0
    %1392 = vmatprep.subr.bf16.mxu0 0
    %1393 = vmatpush1.bf16.msra.mxu0 0
    %1394 = vmatprep.subr.bf16.mxu0 0
    %1395 = vmatpush1.bf16.msra.mxu0 0
    %1396 = vmatprep.subr.bf16.mxu0 0
    %1397 = vmatpush1.bf16.msra.mxu0 0
    %1398 = vmatprep.subr.bf16.mxu0 0
    %1399 = vmatpush1.bf16.msra.mxu0 0
    %1400 = vmatprep.subr.bf16.mxu0 0
    %1401 = vmatpush1.bf16.msra.mxu0 0
    %1402 = vmatprep.subr.bf16.mxu0 0
    %1403 = vmatpush1.bf16.msra.mxu0 0
    %1404 = vmatprep.subr.bf16.mxu0 0
    %1405 = vmatpush1.bf16.msra.mxu0 0
    %1406 = vmatprep.subr.bf16.mxu0 0
    %1407 = vmatpush1.bf16.msra.mxu0 0
    %1408 = vmatprep.subr.bf16.mxu0 0
    %1409 = vmatpush1.bf16.msra.mxu0 0
    %1410 = vmatprep.subr.bf16.mxu0 0
    %1411 = vmatpush1.bf16.msra.mxu0 0
    %1412 = vmatprep.mubr.bf16.mxu0 0
    %1413 = vmatmul.mubr.bf16.gmra.mrb[0].mxu0 %v1249
    %v1414 = vpop.f32.mrb[0].mxu0
    %v1415 = vadd.f32 %v1372, %v1414
    %v1416 = vpop.f32.mrb[0].mxu0
    %v1417 = vadd.f32 %v1374, %v1416
    %v1418 = vpop.f32.mrb[0].mxu0
    %v1419 = vadd.f32 %v1376, %v1418
    %v1420 = vpop.f32.mrb[0].mxu0
    %v1421 = vadd.f32 %v1378, %v1420
    %1422 = vdwg.mxu0
    %1423 = vmatprep.subr.bf16.mxu0 %v858
    %1424 = vmatpush1.bf16.msra.mxu0 %v857
    %1425 = vmatprep.subr.bf16.mxu0 %v862
    %1426 = vmatpush1.bf16.msra.mxu0 %v861
    %1427 = vmatprep.subr.bf16.mxu0 %v866
    %1428 = vmatpush1.bf16.msra.mxu0 %v865
    %1429 = vmatprep.subr.bf16.mxu0 %v870
    %1430 = vmatpush1.bf16.msra.mxu0 %v869
    %1431 = vmatprep.subr.bf16.mxu0 %v874
    %1432 = vmatpush1.bf16.msra.mxu0 %v873
    %1433 = vmatprep.subr.bf16.mxu0 %v878
    %1434 = vmatpush1.bf16.msra.mxu0 %v877
    %1435 = vmatprep.subr.bf16.mxu0 %v882
    %1436 = vmatpush1.bf16.msra.mxu0 %v881
    %1437 = vmatprep.subr.bf16.mxu0 %v886
    %1438 = vmatpush1.bf16.msra.mxu0 %v885
    %1439 = vmatprep.subr.bf16.mxu0 %v890
    %1440 = vmatpush1.bf16.msra.mxu0 %v889
    %1441 = vmatprep.subr.bf16.mxu0 %v894
    %1442 = vmatpush1.bf16.msra.mxu0 %v893
    %1443 = vmatprep.subr.bf16.mxu0 %v898
    %1444 = vmatpush1.bf16.msra.mxu0 %v897
    %1445 = vmatprep.subr.bf16.mxu0 %v902
    %1446 = vmatpush1.bf16.msra.mxu0 %v901
    %1447 = vmatprep.subr.bf16.mxu0 %v906
    %1448 = vmatpush1.bf16.msra.mxu0 %v905
    %1449 = vmatprep.subr.bf16.mxu0 %v910
    %1450 = vmatpush1.bf16.msra.mxu0 %v909
    %1451 = vmatprep.subr.bf16.mxu0 %v914
    %1452 = vmatpush1.bf16.msra.mxu0 %v913
    %1453 = vmatprep.subr.bf16.mxu0 %v918
    %1454 = vmatpush1.bf16.msra.mxu0 %v917
    %1455 = vmatprep.mubr.bf16.mxu0 %v43
    %1456 = vmatmul.mubr.bf16.gmra.mrb[0].mxu0 %v42
    %v1457 = vpop.f32.mrb[0].mxu0
    %v1458 = vadd.f32 %v258, %v1457
    %v1459 = vpop.f32.mrb[0].mxu0
    %v1460 = vadd.f32 %v262, %v1459
    %v1461 = vpop.f32.mrb[0].mxu0
    %v1462 = vadd.f32 %v258, %v1461
    %v1463 = vpop.f32.mrb[0].mxu0
    %v1464 = vadd.f32 %v262, %v1463
    %1465 = vdwg.mxu0
    %1466 = vmatprep.subr.bf16.mxu0 %v922
    %1467 = vmatpush1.bf16.msra.mxu0 %v921
    %1468 = vmatprep.subr.bf16.mxu0 %v926
    %1469 = vmatpush1.bf16.msra.mxu0 %v925
    %1470 = vmatprep.subr.bf16.mxu0 %v930
    %1471 = vmatpush1.bf16.msra.mxu0 %v929
    %1472 = vmatprep.subr.bf16.mxu0 %v934
    %1473 = vmatpush1.bf16.msra.mxu0 %v933
    %1474 = vmatprep.subr.bf16.mxu0 %v938
    %1475 = vmatpush1.bf16.msra.mxu0 %v937
    %1476 = vmatprep.subr.bf16.mxu0 %v942
    %1477 = vmatpush1.bf16.msra.mxu0 %v941
    %1478 = vmatprep.subr.bf16.mxu0 %v946
    %1479 = vmatpush1.bf16.msra.mxu0 %v945
    %1480 = vmatprep.subr.bf16.mxu0 %v950
    %1481 = vmatpush1.bf16.msra.mxu0 %v949
    %1482 = vmatprep.subr.bf16.mxu0 %v954
    %1483 = vmatpush1.bf16.msra.mxu0 %v953
    %1484 = vmatprep.subr.bf16.mxu0 %v958
    %1485 = vmatpush1.bf16.msra.mxu0 %v957
    %1486 = vmatprep.subr.bf16.mxu0 %v962
    %1487 = vmatpush1.bf16.msra.mxu0 %v961
    %1488 = vmatprep.subr.bf16.mxu0 %v966
    %1489 = vmatpush1.bf16.msra.mxu0 %v965
    %1490 = vmatprep.subr.bf16.mxu0 %v970
    %1491 = vmatpush1.bf16.msra.mxu0 %v969
    %1492 = vmatprep.subr.bf16.mxu0 %v974
    %1493 = vmatpush1.bf16.msra.mxu0 %v973
    %1494 = vmatprep.subr.bf16.mxu0 %v978
    %1495 = vmatpush1.bf16.msra.mxu0 %v977
    %1496 = vmatprep.subr.bf16.mxu0 %v982
    %1497 = vmatpush1.bf16.msra.mxu0 %v981
    %1498 = vmatprep.mubr.bf16.mxu0 %v45
    %1499 = vmatmul.mubr.bf16.gmra.mrb[0].mxu0 %v44
    %v1500 = vpop.f32.mrb[0].mxu0
    %v1501 = vadd.f32 %v1458, %v1500
    %v1502 = vpop.f32.mrb[0].mxu0
    %v1503 = vadd.f32 %v1460, %v1502
    %v1504 = vpop.f32.mrb[0].mxu0
    %v1505 = vadd.f32 %v1462, %v1504
    %v1506 = vpop.f32.mrb[0].mxu0
    %v1507 = vadd.f32 %v1464, %v1506
    %1508 = vdwg.mxu0
    %1509 = vmatprep.subr.bf16.mxu0 %v986
    %1510 = vmatpush1.bf16.msra.mxu0 %v985
    %1511 = vmatprep.subr.bf16.mxu0 %v990
    %1512 = vmatpush1.bf16.msra.mxu0 %v989
    %1513 = vmatprep.subr.bf16.mxu0 %v994
    %1514 = vmatpush1.bf16.msra.mxu0 %v993
    %1515 = vmatprep.subr.bf16.mxu0 %v998
    %1516 = vmatpush1.bf16.msra.mxu0 %v997
    %1517 = vmatprep.subr.bf16.mxu0 %v1002
    %1518 = vmatpush1.bf16.msra.mxu0 %v1001
    %1519 = vmatprep.subr.bf16.mxu0 %v1006
    %1520 = vmatpush1.bf16.msra.mxu0 %v1005
    %1521 = vmatprep.subr.bf16.mxu0 %v1010
    %1522 = vmatpush1.bf16.msra.mxu0 %v1009
    %1523 = vmatprep.subr.bf16.mxu0 %v1014
    %1524 = vmatpush1.bf16.msra.mxu0 %v1013
    %1525 = vmatprep.subr.bf16.mxu0 %v1018
    %1526 = vmatpush1.bf16.msra.mxu0 %v1017
    %1527 = vmatprep.subr.bf16.mxu0 %v1022
    %1528 = vmatpush1.bf16.msra.mxu0 %v1021
    %1529 = vmatprep.subr.bf16.mxu0 %v1026
    %1530 = vmatpush1.bf16.msra.mxu0 %v1025
    %1531 = vmatprep.subr.bf16.mxu0 %v1030
    %1532 = vmatpush1.bf16.msra.mxu0 %v1029
    %1533 = vmatprep.subr.bf16.mxu0 %v1034
    %1534 = vmatpush1.bf16.msra.mxu0 %v1033
    %1535 = vmatprep.subr.bf16.mxu0 %v1038
    %1536 = vmatpush1.bf16.msra.mxu0 %v1037
    %1537 = vmatprep.subr.bf16.mxu0 %v1042
    %1538 = vmatpush1.bf16.msra.mxu0 %v1041
    %1539 = vmatprep.subr.bf16.mxu0 %v1046
    %1540 = vmatpush1.bf16.msra.mxu0 %v1045
    %1541 = vmatprep.mubr.bf16.mxu0 %v47
    %1542 = vmatmul.mubr.bf16.gmra.mrb[0].mxu0 %v46
    %v1543 = vpop.f32.mrb[0].mxu0
    %v1544 = vadd.f32 %v1501, %v1543
    %v1545 = vpop.f32.mrb[0].mxu0
    %v1546 = vadd.f32 %v1503, %v1545
    %v1547 = vpop.f32.mrb[0].mxu0
    %v1548 = vadd.f32 %v1505, %v1547
    %v1549 = vpop.f32.mrb[0].mxu0
    %v1550 = vadd.f32 %v1507, %v1549
    %1551 = vdwg.mxu0
    %1552 = vmatprep.subr.bf16.mxu0 %v1050
    %1553 = vmatpush1.bf16.msra.mxu0 %v1049
    %1554 = vmatprep.subr.bf16.mxu0 0
    %1555 = vmatpush1.bf16.msra.mxu0 0
    %1556 = vmatprep.subr.bf16.mxu0 0
    %1557 = vmatpush1.bf16.msra.mxu0 0
    %1558 = vmatprep.subr.bf16.mxu0 0
    %1559 = vmatpush1.bf16.msra.mxu0 0
    %1560 = vmatprep.subr.bf16.mxu0 0
    %1561 = vmatpush1.bf16.msra.mxu0 0
    %1562 = vmatprep.subr.bf16.mxu0 0
    %1563 = vmatpush1.bf16.msra.mxu0 0
    %1564 = vmatprep.subr.bf16.mxu0 0
    %1565 = vmatpush1.bf16.msra.mxu0 0
    %1566 = vmatprep.subr.bf16.mxu0 0
    %1567 = vmatpush1.bf16.msra.mxu0 0
    %1568 = vmatprep.subr.bf16.mxu0 0
    %1569 = vmatpush1.bf16.msra.mxu0 0
    %1570 = vmatprep.subr.bf16.mxu0 0
    %1571 = vmatpush1.bf16.msra.mxu0 0
    %1572 = vmatprep.subr.bf16.mxu0 0
    %1573 = vmatpush1.bf16.msra.mxu0 0
    %1574 = vmatprep.subr.bf16.mxu0 0
    %1575 = vmatpush1.bf16.msra.mxu0 0
    %1576 = vmatprep.subr.bf16.mxu0 0
    %1577 = vmatpush1.bf16.msra.mxu0 0
    %1578 = vmatprep.subr.bf16.mxu0 0
    %1579 = vmatpush1.bf16.msra.mxu0 0
    %1580 = vmatprep.subr.bf16.mxu0 0
    %1581 = vmatpush1.bf16.msra.mxu0 0
    %1582 = vmatprep.subr.bf16.mxu0 0
    %1583 = vmatpush1.bf16.msra.mxu0 0
    %1584 = vmatprep.mubr.bf16.mxu0 0
    %1585 = vmatmul.mubr.bf16.gmra.mrb[0].mxu0 %v1249
    %v1586 = vpop.f32.mrb[0].mxu0
    %v1587 = vadd.f32 %v1544, %v1586
    %v1588 = vpop.f32.mrb[0].mxu0
    %v1589 = vadd.f32 %v1546, %v1588
    %v1590 = vpop.f32.mrb[0].mxu0
    %v1591 = vadd.f32 %v1548, %v1590
    %v1592 = vpop.f32.mrb[0].mxu0
    %v1593 = vadd.f32 %v1550, %v1592
    %1594 = vdwg.mxu0
    %v1595 = vmax.f32 %v1415, 0.0
    %v1596 = vmax.f32 %v1417, 0.0
    %v1597 = vmax.f32 %v1587, 0.0
    %v1598 = vmax.f32 %v1589, 0.0
    %v1599 = vmax.f32 %v1419, 0.0
    %v1600 = vmax.f32 %v1421, 0.0
    %v1601 = vmax.f32 %v1591, 0.0
    %v1602 = vmax.f32 %v1593, 0.0
    %v1603 = vpack.c.bf16 %v1599, %v1595
    %v1604 = vpack.c.bf16 %v1600, %v1596
    %v1605 = vpack.c.bf16 %v1601, %v1597
    %v1606 = vpack.c.bf16 %v1602, %v1598
    %v1607 = vld [vmem:[%s3] sm:$0xff]
    %v1608 = vld [vmem:[%s3 + $0x8] sm:$0xff]
    %v1609 = vld [vmem:[%s3 + $0x10] sm:$0xff]
    %v1610 = vld [vmem:[%s3 + $0x18] sm:$0xff]
    %v1611 = vld [vmem:[%s3 + $0x20] sm:$0xff]
    %v1612 = vld [vmem:[%s3 + $0x28] sm:$0xff]
    %v1613 = vld [vmem:[%s3 + $0x30] sm:$0xff]
    %v1614 = vld [vmem:[%s3 + $0x38] sm:$0xff]
    %v1615 = vld [vmem:[%s3 + $0x40] sm:$0xff]
    %v1616 = vld [vmem:[%s3 + $0x48] sm:$0xff]
    %v1617 = vld [vmem:[%s3 + $0x50] sm:$0xff]
    %v1618 = vld [vmem:[%s3 + $0x58] sm:$0xff]
    %v1619 = vld [vmem:[%s3 + $0x60] sm:$0xff]
    %v1620 = vld [vmem:[%s3 + $0x68] sm:$0xff]
    %v1621 = vld [vmem:[%s3 + $0x70] sm:$0xff]
    %v1622 = vld [vmem:[%s3 + $0x78] sm:$0xff]
    %v1623 = vld [vmem:[%s3 + $0x80] sm:$0xff]
    %v1624 = vld [vmem:[%s3 + $0x88] sm:$0xff]
    %v1625 = vld [vmem:[%s3 + $0x90] sm:$0xff]
    %v1626 = vld [vmem:[%s3 + $0x98] sm:$0xff]
    %v1627 = vld [vmem:[%s3 + $0xa0] sm:$0xff]
    %v1628 = vld [vmem:[%s3 + $0xa8] sm:$0xff]
    %v1629 = vld [vmem:[%s3 + $0xb0] sm:$0xff]
    %v1630 = vld [vmem:[%s3 + $0xb8] sm:$0xff]
    %v1631 = vld [vmem:[%s3 + $0xc0] sm:$0xff]
    %v1632 = vld [vmem:[%s3 + $0xc8] sm:$0xff]
    %v1633 = vld [vmem:[%s3 + $0xd0] sm:$0xff]
    %v1634 = vld [vmem:[%s3 + $0xd8] sm:$0xff]
    %v1635 = vld [vmem:[%s3 + $0xe0] sm:$0xff]
    %v1636 = vld [vmem:[%s3 + $0xe8] sm:$0xff]
    %v1637 = vld [vmem:[%s3 + $0xf0] sm:$0xff]
    %v1638 = vld [vmem:[%s3 + $0xf8] sm:$0xff]
    %v1639 = vld [vmem:[%s3 + $0x100] sm:$0xff]
    %v1640 = vld [vmem:[%s3 + $0x108] sm:$0xff]
    %v1641 = vld [vmem:[%s3 + $0x110] sm:$0xff]
    %v1642 = vld [vmem:[%s3 + $0x118] sm:$0xff]
    %v1643 = vld [vmem:[%s3 + $0x120] sm:$0xff]
    %v1644 = vld [vmem:[%s3 + $0x128] sm:$0xff]
    %v1645 = vld [vmem:[%s3 + $0x130] sm:$0xff]
    %v1646 = vld [vmem:[%s3 + $0x138] sm:$0xff]
    %v1647 = vld [vmem:[%s3 + $0x140] sm:$0xff]
    %v1648 = vld [vmem:[%s3 + $0x148] sm:$0xff]
    %v1649 = vld [vmem:[%s3 + $0x150] sm:$0xff]
    %v1650 = vld [vmem:[%s3 + $0x158] sm:$0xff]
    %v1651 = vld [vmem:[%s3 + $0x160] sm:$0xff]
    %v1652 = vld [vmem:[%s3 + $0x168] sm:$0xff]
    %v1653 = vld [vmem:[%s3 + $0x170] sm:$0xff]
    %v1654 = vld [vmem:[%s3 + $0x178] sm:$0xff]
    %v1655 = vld [vmem:[%s3 + $0x180] sm:$0xff]
    %v1656 = vld [vmem:[%s3 + $0x188] sm:$0xff]
    %v1657 = vld [vmem:[%s3 + $0x190] sm:$0xff]
    %v1658 = vld [vmem:[%s3 + $0x198] sm:$0xff]
    %v1659 = vld [vmem:[%s3 + $0x1a0] sm:$0xff]
    %v1660 = vld [vmem:[%s3 + $0x1a8] sm:$0xff]
    %v1661 = vld [vmem:[%s3 + $0x1b0] sm:$0xff]
    %v1662 = vld [vmem:[%s3 + $0x1b8] sm:$0xff]
    %v1663 = vld [vmem:[%s3 + $0x1c0] sm:$0xff]
    %v1664 = vld [vmem:[%s3 + $0x1c8] sm:$0xff]
    %v1665 = vld [vmem:[%s3 + $0x1d0] sm:$0xff]
    %v1666 = vld [vmem:[%s3 + $0x1d8] sm:$0xff]
    %v1667 = vld [vmem:[%s3 + $0x1e0] sm:$0xff]
    %v1668 = vld [vmem:[%s3 + $0x1e8] sm:$0xff]
    %v1669 = vld [vmem:[%s3 + $0x1f0] sm:$0xff]
    %v1670 = vld [vmem:[%s3 + $0x1f8] sm:$0xff]
    %v1671 = vld [vmem:[%s3 + $0x200] sm:$0xff]
    %v1672 = vld [vmem:[%s3 + $0x208] sm:$0xff]
    %v1673 = vld [vmem:[%s3 + $0x210] sm:$0xff]
    %v1674 = vld [vmem:[%s3 + $0x218] sm:$0xff]
    %v1675 = vld [vmem:[%s3 + $0x220] sm:$0xff]
    %v1676 = vld [vmem:[%s3 + $0x228] sm:$0xff]
    %v1677 = vld [vmem:[%s3 + $0x230] sm:$0xff]
    %v1678 = vld [vmem:[%s3 + $0x238] sm:$0xff]
    %v1679 = vld [vmem:[%s3 + $0x240] sm:$0xff]
    %v1680 = vld [vmem:[%s3 + $0x248] sm:$0xff]
    %v1681 = vld [vmem:[%s3 + $0x250] sm:$0xff]
    %v1682 = vld [vmem:[%s3 + $0x258] sm:$0xff]
    %v1683 = vld [vmem:[%s3 + $0x260] sm:$0xff]
    %v1684 = vld [vmem:[%s3 + $0x268] sm:$0xff]
    %v1685 = vld [vmem:[%s3 + $0x270] sm:$0xff]
    %v1686 = vld [vmem:[%s3 + $0x278] sm:$0xff]
    %v1687 = vld [vmem:[%s3 + $0x280] sm:$0xff]
    %v1688 = vld [vmem:[%s3 + $0x288] sm:$0xff]
    %v1689 = vld [vmem:[%s3 + $0x290] sm:$0xff]
    %v1690 = vld [vmem:[%s3 + $0x298] sm:$0xff]
    %v1691 = vld [vmem:[%s3 + $0x2a0] sm:$0xff]
    %v1692 = vld [vmem:[%s3 + $0x2a8] sm:$0xff]
    %v1693 = vld [vmem:[%s3 + $0x2b0] sm:$0xff]
    %v1694 = vld [vmem:[%s3 + $0x2b8] sm:$0xff]
    %v1695 = vld [vmem:[%s3 + $0x2c0] sm:$0xff]
    %v1696 = vld [vmem:[%s3 + $0x2c8] sm:$0xff]
    %v1697 = vld [vmem:[%s3 + $0x2d0] sm:$0xff]
    %v1698 = vld [vmem:[%s3 + $0x2d8] sm:$0xff]
    %v1699 = vld [vmem:[%s3 + $0x2e0] sm:$0xff]
    %v1700 = vld [vmem:[%s3 + $0x2e8] sm:$0xff]
    %v1701 = vld [vmem:[%s3 + $0x2f0] sm:$0xff]
    %v1702 = vld [vmem:[%s3 + $0x2f8] sm:$0xff]
    %v1703 = vld [vmem:[%s3 + $0x300] sm:$0xff]
    %v1704 = vld [vmem:[%s3 + $0x308] sm:$0xff]
    %v1705 = vld [vmem:[%s3 + $0x310] sm:$0xff]
    %v1706 = vld [vmem:[%s3 + $0x318] sm:$0xff]
    %v1707 = vld [vmem:[%s4] sm:$0xf]
    %v1709 = vlaneseq
    %v1710 = vshrl.u32 %v1709, 7
    %v1711 = vsub.s32 0, %v1710
    %v1712 = vrot.slane %v1707, %v1711
    %v1713 = vlaneseq
    %v1714 = vshrl.u32 %v1713, 7
    %v1715 = vsub.s32 1, %v1714
    %v1716 = vrot.slane %v1707, %v1715
    %v1717 = vlaneseq
    %v1718 = vshrl.u32 %v1717, 7
    %v1719 = vsub.s32 2, %v1718
    %v1720 = vrot.slane %v1707, %v1719
    %v1721 = vlaneseq
    %v1722 = vshrl.u32 %v1721, 7
    %v1723 = vsub.s32 3, %v1722
    %v1724 = vrot.slane %v1707, %v1723
    %v1829 = vunpack.c.l.b16 %v1607
    %v1830 = vunpack.c.h.b16 %v1607
    %v1831 = vunpack.c.l.b16 %v1608
    %v1832 = vunpack.c.h.b16 %v1608
    %v1833 = vunpack.c.l.b16 %v1609
    %v1834 = vunpack.c.h.b16 %v1609
    %v1835 = vunpack.c.l.b16 %v1610
    %v1836 = vunpack.c.h.b16 %v1610
    %v1837 = vunpack.c.l.b16 %v1611
    %v1838 = vunpack.c.h.b16 %v1611
    %v1839 = vunpack.c.l.b16 %v1612
    %v1840 = vunpack.c.h.b16 %v1612
    %v1841 = vunpack.c.l.b16 %v1613
    %v1842 = vunpack.c.h.b16 %v1613
    %v1843 = vunpack.c.l.b16 %v1614
    %v1844 = vunpack.c.h.b16 %v1614
    %v1845 = vunpack.c.l.b16 %v1615
    %v1846 = vunpack.c.h.b16 %v1615
    %v1847 = vunpack.c.l.b16 %v1616
    %v1848 = vunpack.c.h.b16 %v1616
    %v1849 = vunpack.c.l.b16 %v1617
    %v1850 = vunpack.c.h.b16 %v1617
    %v1851 = vunpack.c.l.b16 %v1618
    %v1852 = vunpack.c.h.b16 %v1618
    %v1853 = vunpack.c.l.b16 %v1619
    %v1854 = vunpack.c.h.b16 %v1619
    %v1855 = vunpack.c.l.b16 %v1620
    %v1856 = vunpack.c.h.b16 %v1620
    %v1857 = vunpack.c.l.b16 %v1621
    %v1858 = vunpack.c.h.b16 %v1621
    %v1859 = vunpack.c.l.b16 %v1622
    %v1860 = vunpack.c.h.b16 %v1622
    %v1861 = vunpack.c.l.b16 %v1623
    %v1862 = vunpack.c.h.b16 %v1623
    %v1863 = vunpack.c.l.b16 %v1624
    %v1864 = vunpack.c.h.b16 %v1624
    %v1865 = vunpack.c.l.b16 %v1625
    %v1866 = vunpack.c.h.b16 %v1625
    %v1867 = vunpack.c.l.b16 %v1626
    %v1868 = vunpack.c.h.b16 %v1626
    %v1869 = vunpack.c.l.b16 %v1627
    %v1870 = vunpack.c.h.b16 %v1627
    %v1871 = vunpack.c.l.b16 %v1628
    %v1872 = vunpack.c.h.b16 %v1628
    %v1873 = vunpack.c.l.b16 %v1629
    %v1874 = vunpack.c.h.b16 %v1629
    %v1875 = vunpack.c.l.b16 %v1630
    %v1876 = vunpack.c.h.b16 %v1630
    %v1877 = vunpack.c.l.b16 %v1631
    %v1878 = vunpack.c.h.b16 %v1631
    %v1879 = vunpack.c.l.b16 %v1632
    %v1880 = vunpack.c.h.b16 %v1632
    %v1881 = vunpack.c.l.b16 %v1633
    %v1882 = vunpack.c.h.b16 %v1633
    %v1883 = vunpack.c.l.b16 %v1634
    %v1884 = vunpack.c.h.b16 %v1634
    %v1885 = vunpack.c.l.b16 %v1635
    %v1886 = vunpack.c.h.b16 %v1635
    %v1887 = vunpack.c.l.b16 %v1636
    %v1888 = vunpack.c.h.b16 %v1636
    %v1889 = vunpack.c.l.b16 %v1637
    %v1890 = vunpack.c.h.b16 %v1637
    %v1891 = vunpack.c.l.b16 %v1638
    %v1892 = vunpack.c.h.b16 %v1638
    %v1893 = vunpack.c.l.b16 %v1639
    %v1894 = vunpack.c.h.b16 %v1639
    %v1895 = vunpack.c.l.b16 %v1640
    %v1896 = vunpack.c.h.b16 %v1640
    %v1897 = vunpack.c.l.b16 %v1641
    %v1898 = vunpack.c.h.b16 %v1641
    %v1899 = vunpack.c.l.b16 %v1642
    %v1900 = vunpack.c.h.b16 %v1642
    %v1901 = vunpack.c.l.b16 %v1643
    %v1902 = vunpack.c.h.b16 %v1643
    %v1903 = vunpack.c.l.b16 %v1644
    %v1904 = vunpack.c.h.b16 %v1644
    %v1905 = vunpack.c.l.b16 %v1645
    %v1906 = vunpack.c.h.b16 %v1645
    %v1907 = vunpack.c.l.b16 %v1646
    %v1908 = vunpack.c.h.b16 %v1646
    %v1909 = vunpack.c.l.b16 %v1647
    %v1910 = vunpack.c.h.b16 %v1647
    %v1911 = vunpack.c.l.b16 %v1648
    %v1912 = vunpack.c.h.b16 %v1648
    %v1913 = vunpack.c.l.b16 %v1649
    %v1914 = vunpack.c.h.b16 %v1649
    %v1915 = vunpack.c.l.b16 %v1650
    %v1916 = vunpack.c.h.b16 %v1650
    %v1917 = vunpack.c.l.b16 %v1651
    %v1918 = vunpack.c.h.b16 %v1651
    %v1919 = vunpack.c.l.b16 %v1652
    %v1920 = vunpack.c.h.b16 %v1652
    %v1921 = vunpack.c.l.b16 %v1653
    %v1922 = vunpack.c.h.b16 %v1653
    %v1923 = vunpack.c.l.b16 %v1654
    %v1924 = vunpack.c.h.b16 %v1654
    %v1925 = vunpack.c.l.b16 %v1655
    %v1926 = vunpack.c.h.b16 %v1655
    %v1927 = vunpack.c.l.b16 %v1656
    %v1928 = vunpack.c.h.b16 %v1656
    %v1929 = vunpack.c.l.b16 %v1657
    %v1930 = vunpack.c.h.b16 %v1657
    %v1931 = vunpack.c.l.b16 %v1658
    %v1932 = vunpack.c.h.b16 %v1658
    %v1933 = vunpack.c.l.b16 %v1659
    %v1934 = vunpack.c.h.b16 %v1659
    %v1935 = vunpack.c.l.b16 %v1660
    %v1936 = vunpack.c.h.b16 %v1660
    %v1937 = vunpack.c.l.b16 %v1661
    %v1938 = vunpack.c.h.b16 %v1661
    %v1939 = vunpack.c.l.b16 %v1662
    %v1940 = vunpack.c.h.b16 %v1662
    %v1941 = vunpack.c.l.b16 %v1663
    %v1942 = vunpack.c.h.b16 %v1663
    %v1943 = vunpack.c.l.b16 %v1664
    %v1944 = vunpack.c.h.b16 %v1664
    %v1945 = vunpack.c.l.b16 %v1665
    %v1946 = vunpack.c.h.b16 %v1665
    %v1947 = vunpack.c.l.b16 %v1666
    %v1948 = vunpack.c.h.b16 %v1666
    %v1949 = vunpack.c.l.b16 %v1667
    %v1950 = vunpack.c.h.b16 %v1667
    %v1951 = vunpack.c.l.b16 %v1668
    %v1952 = vunpack.c.h.b16 %v1668
    %v1953 = vunpack.c.l.b16 %v1669
    %v1954 = vunpack.c.h.b16 %v1669
    %v1955 = vunpack.c.l.b16 %v1670
    %v1956 = vunpack.c.h.b16 %v1670
    %v1957 = vunpack.c.l.b16 %v1671
    %v1958 = vunpack.c.h.b16 %v1671
    %v1959 = vunpack.c.l.b16 %v1672
    %v1960 = vunpack.c.h.b16 %v1672
    %v1961 = vunpack.c.l.b16 %v1673
    %v1962 = vunpack.c.h.b16 %v1673
    %v1963 = vunpack.c.l.b16 %v1674
    %v1964 = vunpack.c.h.b16 %v1674
    %v1965 = vunpack.c.l.b16 %v1675
    %v1966 = vunpack.c.h.b16 %v1675
    %v1967 = vunpack.c.l.b16 %v1676
    %v1968 = vunpack.c.h.b16 %v1676
    %v1969 = vunpack.c.l.b16 %v1677
    %v1970 = vunpack.c.h.b16 %v1677
    %v1971 = vunpack.c.l.b16 %v1678
    %v1972 = vunpack.c.h.b16 %v1678
    %v1973 = vunpack.c.l.b16 %v1679
    %v1974 = vunpack.c.h.b16 %v1679
    %v1975 = vunpack.c.l.b16 %v1680
    %v1976 = vunpack.c.h.b16 %v1680
    %v1977 = vunpack.c.l.b16 %v1681
    %v1978 = vunpack.c.h.b16 %v1681
    %v1979 = vunpack.c.l.b16 %v1682
    %v1980 = vunpack.c.h.b16 %v1682
    %v1981 = vunpack.c.l.b16 %v1683
    %v1982 = vunpack.c.h.b16 %v1683
    %v1983 = vunpack.c.l.b16 %v1684
    %v1984 = vunpack.c.h.b16 %v1684
    %v1985 = vunpack.c.l.b16 %v1685
    %v1986 = vunpack.c.h.b16 %v1685
    %v1987 = vunpack.c.l.b16 %v1686
    %v1988 = vunpack.c.h.b16 %v1686
    %v1989 = vunpack.c.l.b16 %v1687
    %v1990 = vunpack.c.h.b16 %v1687
    %v1991 = vunpack.c.l.b16 %v1688
    %v1992 = vunpack.c.h.b16 %v1688
    %v1993 = vunpack.c.l.b16 %v1689
    %v1994 = vunpack.c.h.b16 %v1689
    %v1995 = vunpack.c.l.b16 %v1690
    %v1996 = vunpack.c.h.b16 %v1690
    %v1997 = vunpack.c.l.b16 %v1691
    %v1998 = vunpack.c.h.b16 %v1691
    %v1999 = vunpack.c.l.b16 %v1692
    %v2000 = vunpack.c.h.b16 %v1692
    %v2001 = vunpack.c.l.b16 %v1693
    %v2002 = vunpack.c.h.b16 %v1693
    %v2003 = vunpack.c.l.b16 %v1694
    %v2004 = vunpack.c.h.b16 %v1694
    %v2005 = vunpack.c.l.b16 %v1695
    %v2006 = vunpack.c.h.b16 %v1695
    %v2007 = vunpack.c.l.b16 %v1696
    %v2008 = vunpack.c.h.b16 %v1696
    %v2009 = vunpack.c.l.b16 %v1697
    %v2010 = vunpack.c.h.b16 %v1697
    %v2011 = vunpack.c.l.b16 %v1698
    %v2012 = vunpack.c.h.b16 %v1698
    %v2013 = vunpack.c.l.b16 %v1699
    %v2014 = vunpack.c.h.b16 %v1699
    %v2015 = vunpack.c.l.b16 %v1700
    %v2016 = vunpack.c.h.b16 %v1700
    %v2017 = vunpack.c.l.b16 %v1701
    %v2018 = vunpack.c.h.b16 %v1701
    %v2019 = vunpack.c.l.b16 %v1702
    %v2020 = vunpack.c.h.b16 %v1702
    %v2021 = vunpack.c.l.b16 %v1703
    %v2022 = vunpack.c.h.b16 %v1703
    %v2023 = vunpack.c.l.b16 %v1704
    %v2024 = vunpack.c.h.b16 %v1704
    %v2025 = vunpack.c.l.b16 %v1705
    %v2026 = vunpack.c.h.b16 %v1705
    %v2027 = vunpack.c.l.b16 %v1706
    %v2028 = vunpack.c.h.b16 %v1706
    %v2029 = vpack.c.b16 %v1833, %v1829
    %v2030 = vpack.c.b16 %v1834, %v1830
    %v2031 = vpack.c.b16 %v1835, %v1831
    %v2032 = vpack.c.b16 %v1836, %v1832
    %v2033 = vpack.c.b16 %v1841, %v1837
    %v2034 = vpack.c.b16 %v1842, %v1838
    %v2035 = vpack.c.b16 %v1843, %v1839
    %v2036 = vpack.c.b16 %v1844, %v1840
    %v2037 = vpack.c.b16 %v1849, %v1845
    %v2038 = vpack.c.b16 %v1850, %v1846
    %v2039 = vpack.c.b16 %v1851, %v1847
    %v2040 = vpack.c.b16 %v1852, %v1848
    %v2041 = vpack.c.b16 %v1857, %v1853
    %v2042 = vpack.c.b16 %v1858, %v1854
    %v2043 = vpack.c.b16 %v1859, %v1855
    %v2044 = vpack.c.b16 %v1860, %v1856
    %v2045 = vpack.c.b16 %v1865, %v1861
    %v2046 = vpack.c.b16 %v1866, %v1862
    %v2047 = vpack.c.b16 %v1867, %v1863
    %v2048 = vpack.c.b16 %v1868, %v1864
    %v2049 = vpack.c.b16 %v1873, %v1869
    %v2050 = vpack.c.b16 %v1874, %v1870
    %v2051 = vpack.c.b16 %v1875, %v1871
    %v2052 = vpack.c.b16 %v1876, %v1872
    %v2053 = vpack.c.b16 %v1881, %v1877
    %v2054 = vpack.c.b16 %v1882, %v1878
    %v2055 = vpack.c.b16 %v1883, %v1879
    %v2056 = vpack.c.b16 %v1884, %v1880
    %v2057 = vpack.c.b16 %v1889, %v1885
    %v2058 = vpack.c.b16 %v1890, %v1886
    %v2059 = vpack.c.b16 %v1891, %v1887
    %v2060 = vpack.c.b16 %v1892, %v1888
    %v2061 = vpack.c.b16 %v1897, %v1893
    %v2062 = vpack.c.b16 %v1898, %v1894
    %v2063 = vpack.c.b16 %v1899, %v1895
    %v2064 = vpack.c.b16 %v1900, %v1896
    %v2065 = vpack.c.b16 %v1905, %v1901
    %v2066 = vpack.c.b16 %v1906, %v1902
    %v2067 = vpack.c.b16 %v1907, %v1903
    %v2068 = vpack.c.b16 %v1908, %v1904
    %v2069 = vpack.c.b16 %v1913, %v1909
    %v2070 = vpack.c.b16 %v1914, %v1910
    %v2071 = vpack.c.b16 %v1915, %v1911
    %v2072 = vpack.c.b16 %v1916, %v1912
    %v2073 = vpack.c.b16 %v1921, %v1917
    %v2074 = vpack.c.b16 %v1922, %v1918
    %v2075 = vpack.c.b16 %v1923, %v1919
    %v2076 = vpack.c.b16 %v1924, %v1920
    %v2077 = vpack.c.b16 %v1929, %v1925
    %v2078 = vpack.c.b16 %v1930, %v1926
    %v2079 = vpack.c.b16 %v1931, %v1927
    %v2080 = vpack.c.b16 %v1932, %v1928
    %v2081 = vpack.c.b16 %v1937, %v1933
    %v2082 = vpack.c.b16 %v1938, %v1934
    %v2083 = vpack.c.b16 %v1939, %v1935
    %v2084 = vpack.c.b16 %v1940, %v1936
    %v2085 = vpack.c.b16 %v1945, %v1941
    %v2086 = vpack.c.b16 %v1946, %v1942
    %v2087 = vpack.c.b16 %v1947, %v1943
    %v2088 = vpack.c.b16 %v1948, %v1944
    %v2089 = vpack.c.b16 %v1953, %v1949
    %v2090 = vpack.c.b16 %v1954, %v1950
    %v2091 = vpack.c.b16 %v1955, %v1951
    %v2092 = vpack.c.b16 %v1956, %v1952
    %v2093 = vpack.c.b16 %v1961, %v1957
    %v2094 = vpack.c.b16 %v1962, %v1958
    %v2095 = vpack.c.b16 %v1963, %v1959
    %v2096 = vpack.c.b16 %v1964, %v1960
    %v2097 = vpack.c.b16 %v1969, %v1965
    %v2098 = vpack.c.b16 %v1970, %v1966
    %v2099 = vpack.c.b16 %v1971, %v1967
    %v2100 = vpack.c.b16 %v1972, %v1968
    %v2101 = vpack.c.b16 %v1977, %v1973
    %v2102 = vpack.c.b16 %v1978, %v1974
    %v2103 = vpack.c.b16 %v1979, %v1975
    %v2104 = vpack.c.b16 %v1980, %v1976
    %v2105 = vpack.c.b16 %v1985, %v1981
    %v2106 = vpack.c.b16 %v1986, %v1982
    %v2107 = vpack.c.b16 %v1987, %v1983
    %v2108 = vpack.c.b16 %v1988, %v1984
    %v2109 = vpack.c.b16 %v1993, %v1989
    %v2110 = vpack.c.b16 %v1994, %v1990
    %v2111 = vpack.c.b16 %v1995, %v1991
    %v2112 = vpack.c.b16 %v1996, %v1992
    %v2113 = vpack.c.b16 %v2001, %v1997
    %v2114 = vpack.c.b16 %v2002, %v1998
    %v2115 = vpack.c.b16 %v2003, %v1999
    %v2116 = vpack.c.b16 %v2004, %v2000
    %v2117 = vpack.c.b16 %v2009, %v2005
    %v2118 = vpack.c.b16 %v2010, %v2006
    %v2119 = vpack.c.b16 %v2011, %v2007
    %v2120 = vpack.c.b16 %v2012, %v2008
    %v2121 = vpack.c.b16 %v2017, %v2013
    %v2122 = vpack.c.b16 %v2018, %v2014
    %v2123 = vpack.c.b16 %v2019, %v2015
    %v2124 = vpack.c.b16 %v2020, %v2016
    %v2125 = vpack.c.b16 %v2025, %v2021
    %v2126 = vpack.c.b16 %v2026, %v2022
    %v2127 = vpack.c.b16 %v2027, %v2023
    %v2128 = vpack.c.b16 %v2028, %v2024
    %v2230 = vsel %vm1247, %v1606, 0
    %2232 = vmatprep.subr.bf16.mxu0 %v2030
    %2233 = vmatpush1.bf16.msra.mxu0 %v2029
    %2234 = vmatprep.subr.bf16.mxu0 %v2034
    %2235 = vmatpush1.bf16.msra.mxu0 %v2033
    %2236 = vmatprep.subr.bf16.mxu0 %v2038
    %2237 = vmatpush1.bf16.msra.mxu0 %v2037
    %2238 = vmatprep.subr.bf16.mxu0 %v2042
    %2239 = vmatpush1.bf16.msra.mxu0 %v2041
    %2240 = vmatprep.subr.bf16.mxu0 %v2046
    %2241 = vmatpush1.bf16.msra.mxu0 %v2045
    %2242 = vmatprep.subr.bf16.mxu0 %v2050
    %2243 = vmatpush1.bf16.msra.mxu0 %v2049
    %2244 = vmatprep.subr.bf16.mxu0 %v2054
    %2245 = vmatpush1.bf16.msra.mxu0 %v2053
    %2246 = vmatprep.subr.bf16.mxu0 %v2058
    %2247 = vmatpush1.bf16.msra.mxu0 %v2057
    %2248 = vmatprep.subr.bf16.mxu0 %v2062
    %2249 = vmatpush1.bf16.msra.mxu0 %v2061
    %2250 = vmatprep.subr.bf16.mxu0 %v2066
    %2251 = vmatpush1.bf16.msra.mxu0 %v2065
    %2252 = vmatprep.subr.bf16.mxu0 %v2070
    %2253 = vmatpush1.bf16.msra.mxu0 %v2069
    %2254 = vmatprep.subr.bf16.mxu0 %v2074
    %2255 = vmatpush1.bf16.msra.mxu0 %v2073
    %2256 = vmatprep.subr.bf16.mxu0 %v2078
    %2257 = vmatpush1.bf16.msra.mxu0 %v2077
    %2258 = vmatprep.subr.bf16.mxu0 %v2082
    %2259 = vmatpush1.bf16.msra.mxu0 %v2081
    %2260 = vmatprep.subr.bf16.mxu0 %v2086
    %2261 = vmatpush1.bf16.msra.mxu0 %v2085
    %2262 = vmatprep.subr.bf16.mxu0 %v2090
    %2263 = vmatpush1.bf16.msra.mxu0 %v2089
    %2264 = vmatprep.mubr.bf16.mxu0 %v1604
    %2265 = vmatmul.mubr.bf16.gmra.mrb[0].mxu0 %v1603
    %v2266 = vpop.f32.mrb[0].mxu0
    %v2267 = vadd.f32 %v1712, %v2266
    %v2268 = vpop.f32.mrb[0].mxu0
    %v2269 = vadd.f32 %v1716, %v2268
    %v2270 = vpop.f32.mrb[0].mxu0
    %v2271 = vadd.f32 %v1712, %v2270
    %v2272 = vpop.f32.mrb[0].mxu0
    %v2273 = vadd.f32 %v1716, %v2272
    %2274 = vdwg.mxu0
    %2275 = vmatprep.subr.bf16.mxu0 %v2094
    %2276 = vmatpush1.bf16.msra.mxu0 %v2093
    %2277 = vmatprep.subr.bf16.mxu0 %v2098
    %2278 = vmatpush1.bf16.msra.mxu0 %v2097
    %2279 = vmatprep.subr.bf16.mxu0 %v2102
    %2280 = vmatpush1.bf16.msra.mxu0 %v2101
    %2281 = vmatprep.subr.bf16.mxu0 %v2106
    %2282 = vmatpush1.bf16.msra.mxu0 %v2105
    %2283 = vmatprep.subr.bf16.mxu0 %v2110
    %2284 = vmatpush1.bf16.msra.mxu0 %v2109
    %2285 = vmatprep.subr.bf16.mxu0 %v2114
    %2286 = vmatpush1.bf16.msra.mxu0 %v2113
    %2287 = vmatprep.subr.bf16.mxu0 %v2118
    %2288 = vmatpush1.bf16.msra.mxu0 %v2117
    %2289 = vmatprep.subr.bf16.mxu0 %v2122
    %2290 = vmatpush1.bf16.msra.mxu0 %v2121
    %2291 = vmatprep.subr.bf16.mxu0 %v2126
    %2292 = vmatpush1.bf16.msra.mxu0 %v2125
    %2293 = vmatprep.subr.bf16.mxu0 0
    %2294 = vmatpush1.bf16.msra.mxu0 0
    %2295 = vmatprep.subr.bf16.mxu0 0
    %2296 = vmatpush1.bf16.msra.mxu0 0
    %2297 = vmatprep.subr.bf16.mxu0 0
    %2298 = vmatpush1.bf16.msra.mxu0 0
    %2299 = vmatprep.subr.bf16.mxu0 0
    %2300 = vmatpush1.bf16.msra.mxu0 0
    %2301 = vmatprep.subr.bf16.mxu0 0
    %2302 = vmatpush1.bf16.msra.mxu0 0
    %2303 = vmatprep.subr.bf16.mxu0 0
    %2304 = vmatpush1.bf16.msra.mxu0 0
    %2305 = vmatprep.subr.bf16.mxu0 0
    %2306 = vmatpush1.bf16.msra.mxu0 0
    %2307 = vmatprep.mubr.bf16.mxu0 %v2230
    %2308 = vmatmul.mubr.bf16.gmra.mrb[0].mxu0 %v1605
    %v2309 = vpop.f32.mrb[0].mxu0
    %v2310 = vadd.f32 %v2267, %v2309
    %v2311 = vpop.f32.mrb[0].mxu0
    %v2312 = vadd.f32 %v2269, %v2311
    %v2313 = vpop.f32.mrb[0].mxu0
    %v2314 = vadd.f32 %v2271, %v2313
    %v2315 = vpop.f32.mrb[0].mxu0
    %v2316 = vadd.f32 %v2273, %v2315
    %2317 = vdwg.mxu0
    %2318 = vmatprep.subr.bf16.mxu0 %v2032
    %2319 = vmatpush1.bf16.msra.mxu0 %v2031
    %2320 = vmatprep.subr.bf16.mxu0 %v2036
    %2321 = vmatpush1.bf16.msra.mxu0 %v2035
    %2322 = vmatprep.subr.bf16.mxu0 %v2040
    %2323 = vmatpush1.bf16.msra.mxu0 %v2039
    %2324 = vmatprep.subr.bf16.mxu0 %v2044
    %2325 = vmatpush1.bf16.msra.mxu0 %v2043
    %2326 = vmatprep.subr.bf16.mxu0 %v2048
    %2327 = vmatpush1.bf16.msra.mxu0 %v2047
    %2328 = vmatprep.subr.bf16.mxu0 %v2052
    %2329 = vmatpush1.bf16.msra.mxu0 %v2051
    %2330 = vmatprep.subr.bf16.mxu0 %v2056
    %2331 = vmatpush1.bf16.msra.mxu0 %v2055
    %2332 = vmatprep.subr.bf16.mxu0 %v2060
    %2333 = vmatpush1.bf16.msra.mxu0 %v2059
    %2334 = vmatprep.subr.bf16.mxu0 %v2064
    %2335 = vmatpush1.bf16.msra.mxu0 %v2063
    %2336 = vmatprep.subr.bf16.mxu0 %v2068
    %2337 = vmatpush1.bf16.msra.mxu0 %v2067
    %2338 = vmatprep.subr.bf16.mxu0 %v2072
    %2339 = vmatpush1.bf16.msra.mxu0 %v2071
    %2340 = vmatprep.subr.bf16.mxu0 %v2076
    %2341 = vmatpush1.bf16.msra.mxu0 %v2075
    %2342 = vmatprep.subr.bf16.mxu0 %v2080
    %2343 = vmatpush1.bf16.msra.mxu0 %v2079
    %2344 = vmatprep.subr.bf16.mxu0 %v2084
    %2345 = vmatpush1.bf16.msra.mxu0 %v2083
    %2346 = vmatprep.subr.bf16.mxu0 %v2088
    %2347 = vmatpush1.bf16.msra.mxu0 %v2087
    %2348 = vmatprep.subr.bf16.mxu0 %v2092
    %2349 = vmatpush1.bf16.msra.mxu0 %v2091
    %2350 = vmatprep.mubr.bf16.mxu0 %v1604
    %2351 = vmatmul.mubr.bf16.gmra.mrb[0].mxu0 %v1603
    %v2352 = vpop.f32.mrb[0].mxu0
    %v2353 = vadd.f32 %v1720, %v2352
    %v2354 = vpop.f32.mrb[0].mxu0
    %v2355 = vadd.f32 %v1724, %v2354
    %v2356 = vpop.f32.mrb[0].mxu0
    %v2357 = vadd.f32 %v1720, %v2356
    %v2358 = vpop.f32.mrb[0].mxu0
    %v2359 = vadd.f32 %v1724, %v2358
    %2360 = vdwg.mxu0
    %2361 = vmatprep.subr.bf16.mxu0 %v2096
    %2362 = vmatpush1.bf16.msra.mxu0 %v2095
    %2363 = vmatprep.subr.bf16.mxu0 %v2100
    %2364 = vmatpush1.bf16.msra.mxu0 %v2099
    %2365 = vmatprep.subr.bf16.mxu0 %v2104
    %2366 = vmatpush1.bf16.msra.mxu0 %v2103
    %2367 = vmatprep.subr.bf16.mxu0 %v2108
    %2368 = vmatpush1.bf16.msra.mxu0 %v2107
    %2369 = vmatprep.subr.bf16.mxu0 %v2112
    %2370 = vmatpush1.bf16.msra.mxu0 %v2111
    %2371 = vmatprep.subr.bf16.mxu0 %v2116
    %2372 = vmatpush1.bf16.msra.mxu0 %v2115
    %2373 = vmatprep.subr.bf16.mxu0 %v2120
    %2374 = vmatpush1.bf16.msra.mxu0 %v2119
    %2375 = vmatprep.subr.bf16.mxu0 %v2124
    %2376 = vmatpush1.bf16.msra.mxu0 %v2123
    %2377 = vmatprep.subr.bf16.mxu0 %v2128
    %2378 = vmatpush1.bf16.msra.mxu0 %v2127
    %2379 = vmatprep.subr.bf16.mxu0 0
    %2380 = vmatpush1.bf16.msra.mxu0 0
    %2381 = vmatprep.subr.bf16.mxu0 0
    %2382 = vmatpush1.bf16.msra.mxu0 0
    %2383 = vmatprep.subr.bf16.mxu0 0
    %2384 = vmatpush1.bf16.msra.mxu0 0
    %2385 = vmatprep.subr.bf16.mxu0 0
    %2386 = vmatpush1.bf16.msra.mxu0 0
    %2387 = vmatprep.subr.bf16.mxu0 0
    %2388 = vmatpush1.bf16.msra.mxu0 0
    %2389 = vmatprep.subr.bf16.mxu0 0
    %2390 = vmatpush1.bf16.msra.mxu0 0
    %2391 = vmatprep.subr.bf16.mxu0 0
    %2392 = vmatpush1.bf16.msra.mxu0 0
    %2393 = vmatprep.mubr.bf16.mxu0 %v2230
    %2394 = vmatmul.mubr.bf16.gmra.mrb[0].mxu0 %v1605
    %v2395 = vpop.f32.mrb[0].mxu0
    %v2396 = vadd.f32 %v2353, %v2395
    %v2397 = vpop.f32.mrb[0].mxu0
    %v2398 = vadd.f32 %v2355, %v2397
    %v2399 = vpop.f32.mrb[0].mxu0
    %v2400 = vadd.f32 %v2357, %v2399
    %v2401 = vpop.f32.mrb[0].mxu0
    %v2402 = vadd.f32 %v2359, %v2401
    %2403 = vdwg.mxu0
    %v2404 = vmax.f32 %v2310, 0.0
    %v2405 = vmax.f32 %v2312, 0.0
    %v2406 = vmax.f32 %v2396, 0.0
    %v2407 = vmax.f32 %v2398, 0.0
    %v2408 = vmax.f32 %v2314, 0.0
    %v2409 = vmax.f32 %v2316, 0.0
    %v2410 = vmax.f32 %v2400, 0.0
    %v2411 = vmax.f32 %v2402, 0.0
    %v2412 = vpack.c.bf16 %v2408, %v2404
    %v2413 = vpack.c.bf16 %v2409, %v2405
    %v2414 = vpack.c.bf16 %v2410, %v2406
    %v2415 = vpack.c.bf16 %v2411, %v2407
    %v2416 = vld [vmem:[%s5] sm:$0xf]
    %v2417 = vld [vmem:[%s5 + $0x4] sm:$0xf]
    %v2418 = vld [vmem:[%s5 + $0x8] sm:$0xf]
    %v2419 = vld [vmem:[%s5 + $0xc] sm:$0xf]
    %v2420 = vld [vmem:[%s5 + $0x10] sm:$0xf]
    %v2421 = vld [vmem:[%s5 + $0x14] sm:$0xf]
    %v2422 = vld [vmem:[%s5 + $0x18] sm:$0xf]
    %v2423 = vld [vmem:[%s5 + $0x1c] sm:$0xf]
    %v2424 = vld [vmem:[%s5 + $0x20] sm:$0xf]
    %v2425 = vld [vmem:[%s5 + $0x24] sm:$0xf]
    %v2426 = vld [vmem:[%s5 + $0x28] sm:$0xf]
    %v2427 = vld [vmem:[%s5 + $0x2c] sm:$0xf]
    %v2428 = vld [vmem:[%s5 + $0x30] sm:$0xf]
    %v2429 = vld [vmem:[%s5 + $0x34] sm:$0xf]
    %v2430 = vld [vmem:[%s5 + $0x38] sm:$0xf]
    %v2431 = vld [vmem:[%s5 + $0x3c] sm:$0xf]
    %v2432 = vld [vmem:[%s5 + $0x40] sm:$0xf]
    %v2433 = vld [vmem:[%s5 + $0x44] sm:$0xf]
    %v2434 = vld [vmem:[%s5 + $0x48] sm:$0xf]
    %v2435 = vld [vmem:[%s5 + $0x4c] sm:$0xf]
    %v2436 = vld [vmem:[%s5 + $0x50] sm:$0xf]
    %v2437 = vld [vmem:[%s5 + $0x54] sm:$0xf]
    %v2438 = vld [vmem:[%s5 + $0x58] sm:$0xf]
    %v2439 = vld [vmem:[%s5 + $0x5c] sm:$0xf]
    %v2440 = vld [vmem:[%s5 + $0x60] sm:$0xf]
    %v2441 = vld [vmem:[%s5 + $0x64] sm:$0xf]
    %v2442 = vld [vmem:[%s5 + $0x68] sm:$0xf]
    %v2443 = vld [vmem:[%s5 + $0x6c] sm:$0xf]
    %v2444 = vld [vmem:[%s5 + $0x70] sm:$0xf]
    %v2445 = vld [vmem:[%s5 + $0x74] sm:$0xf]
    %v2446 = vld [vmem:[%s5 + $0x78] sm:$0xf]
    %v2447 = vld [vmem:[%s5 + $0x7c] sm:$0xf]
    %v2448 = vld [vmem:[%s5 + $0x80] sm:$0xf]
    %v2449 = vld [vmem:[%s5 + $0x84] sm:$0xf]
    %v2450 = vld [vmem:[%s5 + $0x88] sm:$0xf]
    %v2451 = vld [vmem:[%s5 + $0x8c] sm:$0xf]
    %v2452 = vld [vmem:[%s5 + $0x90] sm:$0xf]
    %v2453 = vld [vmem:[%s5 + $0x94] sm:$0xf]
    %v2454 = vld [vmem:[%s5 + $0x98] sm:$0xf]
    %v2455 = vld [vmem:[%s5 + $0x9c] sm:$0xf]
    %v2456 = vld [vmem:[%s5 + $0xa0] sm:$0xf]
    %v2457 = vld [vmem:[%s5 + $0xa4] sm:$0xf]
    %v2458 = vld [vmem:[%s5 + $0xa8] sm:$0xf]
    %v2459 = vld [vmem:[%s5 + $0xac] sm:$0xf]
    %v2460 = vld [vmem:[%s5 + $0xb0] sm:$0xf]
    %v2461 = vld [vmem:[%s5 + $0xb4] sm:$0xf]
    %v2462 = vld [vmem:[%s5 + $0xb8] sm:$0xf]
    %v2463 = vld [vmem:[%s5 + $0xbc] sm:$0xf]
    %v2464 = vld [vmem:[%s5 + $0xc0] sm:$0xf]
    %v2465 = vld [vmem:[%s5 + $0xc4] sm:$0xf]
    %v2466 = vld [vmem:[%s6] sm:$0x1]
    %v2468 = vlaneseq
    %v2469 = vshrl.u32 %v2468, 7
    %v2470 = vsub.s32 0, %v2469
    %v2471 = vrot.slane %v2466, %v2470
    %v2523 = vunpack.c.l.b16 %v2416
    %v2524 = vunpack.c.l.b16 %v2417
    %v2525 = vunpack.c.l.b16 %v2418
    %v2526 = vunpack.c.l.b16 %v2419
    %v2527 = vunpack.c.l.b16 %v2420
    %v2528 = vunpack.c.l.b16 %v2421
    %v2529 = vunpack.c.l.b16 %v2422
    %v2530 = vunpack.c.l.b16 %v2423
    %v2531 = vunpack.c.l.b16 %v2424
    %v2532 = vunpack.c.l.b16 %v2425
    %v2533 = vunpack.c.l.b16 %v2426
    %v2534 = vunpack.c.l.b16 %v2427
    %v2535 = vunpack.c.l.b16 %v2428
    %v2536 = vunpack.c.l.b16 %v2429
    %v2537 = vunpack.c.l.b16 %v2430
    %v2538 = vunpack.c.l.b16 %v2431
    %v2539 = vunpack.c.l.b16 %v2432
    %v2540 = vunpack.c.l.b16 %v2433
    %v2541 = vunpack.c.l.b16 %v2434
    %v2542 = vunpack.c.l.b16 %v2435
    %v2543 = vunpack.c.l.b16 %v2436
    %v2544 = vunpack.c.l.b16 %v2437
    %v2545 = vunpack.c.l.b16 %v2438
    %v2546 = vunpack.c.l.b16 %v2439
    %v2547 = vunpack.c.l.b16 %v2440
    %v2548 = vunpack.c.l.b16 %v2441
    %v2549 = vunpack.c.l.b16 %v2442
    %v2550 = vunpack.c.l.b16 %v2443
    %v2551 = vunpack.c.l.b16 %v2444
    %v2552 = vunpack.c.l.b16 %v2445
    %v2553 = vunpack.c.l.b16 %v2446
    %v2554 = vunpack.c.l.b16 %v2447
    %v2555 = vunpack.c.l.b16 %v2448
    %v2556 = vunpack.c.l.b16 %v2449
    %v2557 = vunpack.c.l.b16 %v2450
    %v2558 = vunpack.c.l.b16 %v2451
    %v2559 = vunpack.c.l.b16 %v2452
    %v2560 = vunpack.c.l.b16 %v2453
    %v2561 = vunpack.c.l.b16 %v2454
    %v2562 = vunpack.c.l.b16 %v2455
    %v2563 = vunpack.c.l.b16 %v2456
    %v2564 = vunpack.c.l.b16 %v2457
    %v2565 = vunpack.c.l.b16 %v2458
    %v2566 = vunpack.c.l.b16 %v2459
    %v2567 = vunpack.c.l.b16 %v2460
    %v2568 = vunpack.c.l.b16 %v2461
    %v2569 = vunpack.c.l.b16 %v2462
    %v2570 = vunpack.c.l.b16 %v2463
    %v2571 = vunpack.c.l.b16 %v2464
    %v2572 = vunpack.c.l.b16 %v2465
    %v2573 = vpack.c.b16 %v2524, %v2523
    %v2574 = vpack.c.b16 %v2526, %v2525
    %v2575 = vpack.c.b16 %v2528, %v2527
    %v2576 = vpack.c.b16 %v2530, %v2529
    %v2577 = vpack.c.b16 %v2532, %v2531
    %v2578 = vpack.c.b16 %v2534, %v2533
    %v2579 = vpack.c.b16 %v2536, %v2535
    %v2580 = vpack.c.b16 %v2538, %v2537
    %v2581 = vpack.c.b16 %v2540, %v2539
    %v2582 = vpack.c.b16 %v2542, %v2541
    %v2583 = vpack.c.b16 %v2544, %v2543
    %v2584 = vpack.c.b16 %v2546, %v2545
    %v2585 = vpack.c.b16 %v2548, %v2547
    %v2586 = vpack.c.b16 %v2550, %v2549
    %v2587 = vpack.c.b16 %v2552, %v2551
    %v2588 = vpack.c.b16 %v2554, %v2553
    %v2589 = vpack.c.b16 %v2556, %v2555
    %v2590 = vpack.c.b16 %v2558, %v2557
    %v2591 = vpack.c.b16 %v2560, %v2559
    %v2592 = vpack.c.b16 %v2562, %v2561
    %v2593 = vpack.c.b16 %v2564, %v2563
    %v2594 = vpack.c.b16 %v2566, %v2565
    %v2595 = vpack.c.b16 %v2568, %v2567
    %v2596 = vpack.c.b16 %v2570, %v2569
    %v2597 = vpack.c.b16 %v2572, %v2571
    %v2624 = vsel %vm1247, %v2415, 0
    %2626 = vmatprep.subr.bf16.mxu0 0
    %2627 = vmatpush1.bf16.msra.mxu0 %v2573
    %2628 = vmatprep.subr.bf16.mxu0 0
    %2629 = vmatpush1.bf16.msra.mxu0 %v2574
    %2630 = vmatprep.subr.bf16.mxu0 0
    %2631 = vmatpush1.bf16.msra.mxu0 %v2575
    %2632 = vmatprep.subr.bf16.mxu0 0
    %2633 = vmatpush1.bf16.msra.mxu0 %v2576
    %2634 = vmatprep.subr.bf16.mxu0 0
    %2635 = vmatpush1.bf16.msra.mxu0 %v2577
    %2636 = vmatprep.subr.bf16.mxu0 0
    %2637 = vmatpush1.bf16.msra.mxu0 %v2578
    %2638 = vmatprep.subr.bf16.mxu0 0
    %2639 = vmatpush1.bf16.msra.mxu0 %v2579
    %2640 = vmatprep.subr.bf16.mxu0 0
    %2641 = vmatpush1.bf16.msra.mxu0 %v2580
    %2642 = vmatprep.subr.bf16.mxu0 0
    %2643 = vmatpush1.bf16.msra.mxu0 %v2581
    %2644 = vmatprep.subr.bf16.mxu0 0
    %2645 = vmatpush1.bf16.msra.mxu0 %v2582
    %2646 = vmatprep.subr.bf16.mxu0 0
    %2647 = vmatpush1.bf16.msra.mxu0 %v2583
    %2648 = vmatprep.subr.bf16.mxu0 0
    %2649 = vmatpush1.bf16.msra.mxu0 %v2584
    %2650 = vmatprep.subr.bf16.mxu0 0
    %2651 = vmatpush1.bf16.msra.mxu0 %v2585
    %2652 = vmatprep.subr.bf16.mxu0 0
    %2653 = vmatpush1.bf16.msra.mxu0 %v2586
    %2654 = vmatprep.subr.bf16.mxu0 0
    %2655 = vmatpush1.bf16.msra.mxu0 %v2587
    %2656 = vmatprep.subr.bf16.mxu0 0
    %2657 = vmatpush1.bf16.msra.mxu0 %v2588
    %2658 = vmatprep.mubr.bf16.mxu0 %v2413
    %2659 = vmatmul.mubr.bf16.gmra.mrb[0].mxu0 %v2412
    %v2660 = vpop.f32.mrb[0].mxu0
    %v2661 = vadd.f32 %v2471, %v2660
    %v2662 = vpop.f32.mrb[0].mxu0
    %v2663 = vpop.f32.mrb[0].mxu0
    %v2664 = vadd.f32 %v2471, %v2663
    %v2665 = vpop.f32.mrb[0].mxu0
    %2666 = vdwg.mxu0
    %2667 = vmatprep.subr.bf16.mxu0 0
    %2668 = vmatpush1.bf16.msra.mxu0 %v2589
    %2669 = vmatprep.subr.bf16.mxu0 0
    %2670 = vmatpush1.bf16.msra.mxu0 %v2590
    %2671 = vmatprep.subr.bf16.mxu0 0
    %2672 = vmatpush1.bf16.msra.mxu0 %v2591
    %2673 = vmatprep.subr.bf16.mxu0 0
    %2674 = vmatpush1.bf16.msra.mxu0 %v2592
    %2675 = vmatprep.subr.bf16.mxu0 0
    %2676 = vmatpush1.bf16.msra.mxu0 %v2593
    %2677 = vmatprep.subr.bf16.mxu0 0
    %2678 = vmatpush1.bf16.msra.mxu0 %v2594
    %2679 = vmatprep.subr.bf16.mxu0 0
    %2680 = vmatpush1.bf16.msra.mxu0 %v2595
    %2681 = vmatprep.subr.bf16.mxu0 0
    %2682 = vmatpush1.bf16.msra.mxu0 %v2596
    %2683 = vmatprep.subr.bf16.mxu0 0
    %2684 = vmatpush1.bf16.msra.mxu0 %v2597
    %2685 = vmatprep.subr.bf16.mxu0 0
    %2686 = vmatpush1.bf16.msra.mxu0 0
    %2687 = vmatprep.subr.bf16.mxu0 0
    %2688 = vmatpush1.bf16.msra.mxu0 0
    %2689 = vmatprep.subr.bf16.mxu0 0
    %2690 = vmatpush1.bf16.msra.mxu0 0
    %2691 = vmatprep.subr.bf16.mxu0 0
    %2692 = vmatpush1.bf16.msra.mxu0 0
    %2693 = vmatprep.subr.bf16.mxu0 0
    %2694 = vmatpush1.bf16.msra.mxu0 0
    %2695 = vmatprep.subr.bf16.mxu0 0
    %2696 = vmatpush1.bf16.msra.mxu0 0
    %2697 = vmatprep.subr.bf16.mxu0 0
    %2698 = vmatpush1.bf16.msra.mxu0 0
    %2699 = vmatprep.mubr.bf16.mxu0 %v2624
    %2700 = vmatmul.mubr.bf16.gmra.mrb[0].mxu0 %v2414
    %v2701 = vpop.f32.mrb[0].mxu0
    %v2702 = vadd.f32 %v2661, %v2701
    %v2703 = vpop.f32.mrb[0].mxu0
    %v2704 = vpop.f32.mrb[0].mxu0
    %v2705 = vadd.f32 %v2664, %v2704
    %v2706 = vpop.f32.mrb[0].mxu0
    %2707 = vdwg.mxu0
    %2708 = vst [vmem:[#allocation2] sm:$0xff] %v2702
    %2709 = vst [vmem:[#allocation2 + $0x8] sm:$0xff] %v2705
    // Predicated region
    $region30: #{tpu_custom_call.1} parent=1 // pred_check
      _
    $region31: #{tpu_custom_call.1} parent=1 // pred_check_branch
      %2711 = sbr.rel (0) target = $region33
    $region32: #{tpu_custom_call.1} parent=1 // pred_region
      %s2713 = ssub.s32 256, 256
      %2714 = vsyncadd [#allocation3], %s2713
      %s2715 = sshll.u32 [#allocation2], 4
      %s2716 = int_to_ptr.vmem [resolvable:$true] %s2715
      %2721 = dma.vmem_to_hbm [thread:$0]  %s2716, 256, %s7, [#allocation3], 128, 128, 8
    $region33: #{tpu_custom_call.1} parent=1 // pred_fallthru
      _
    // Predicated region
    $region34: #{tpu_custom_call.1} parent=1 // pred_check
      _
    $region35: #{tpu_custom_call.1} parent=1 // pred_check_branch
      %2723 = sbr.rel (0) target = $region37
    $region36: #{tpu_custom_call.1} parent=1 // pred_region
      %2724 = dma.done [#allocation3], 256
    $region37: #{tpu_custom_call.1} parent=1 // pred_fallthru
      _
    %2725 = vsyncpa [#allocation3], 1

</llo_original>
